<compile_context>
chip_gen: v6e
topology: v6e:2x2x1
jax: 0.10.0
libtpu: 0.0.40
codegen_flags: <defaults>
</compile_context>

<pallas_src>
import functools
import math

import jax
import jax.numpy as jnp
from jax.experimental import pallas as pl
from jax.experimental.pallas import tpu as pltpu

_BN_EPS = 1e-5
_VMEM_LIMIT = 48 * 1024 * 1024   # comfortably under v7x's 64 MiB physical VMEM


def _round_up(x, m):
    return (x + m - 1) // m * m


def _pick_tm(m, cap):
    """Row-tile size: large tiles for bandwidth, but >=2 tiles so v7x's
    "parallel" axis can actually feed both TensorCores."""
    tm = min(cap, _round_up(m, 8))
    if tm >= 16 and _round_up(m, tm) // tm < 2:
        tm = _round_up((m + 1) // 2, 8)
    return tm


# --------------------------- Pallas kernels ---------------------------------

def _mm_kernel(x_ref, w_ref, scale_ref, shift_ref, o_ref, acc_ref, *, activation):
    """K-tiled (tm, tk) @ (tk, Cout) -> f32 accumulator -> BN affine -> act."""
    @pl.when(pl.program_id(1) == 0)
    def _init():
        acc_ref[...] = jnp.zeros_like(acc_ref)

    acc_ref[...] += jnp.dot(x_ref[...], w_ref[...],
                            preferred_element_type=jnp.float32)

    @pl.when(pl.program_id(1) == pl.num_programs(1) - 1)
    def _finalize():
        y = acc_ref[...] * scale_ref[...] + shift_ref[...]
        if activation == "relu6":
            y = jnp.clip(y, 0.0, 6.0)
        elif activation == "relu":
            y = jnp.maximum(y, 0.0)
        o_ref[...] = y.astype(o_ref.dtype)


def _mm_res_kernel(x_ref, w_ref, scale_ref, shift_ref, res_ref, o_ref, acc_ref):
    """Projection 1x1 conv + BN + residual add (no activation), K-tiled."""
    @pl.when(pl.program_id(1) == 0)
    def _init():
        acc_ref[...] = jnp.zeros_like(acc_ref)

    acc_ref[...] += jnp.dot(x_ref[...], w_ref[...],
                            preferred_element_type=jnp.float32)

    @pl.when(pl.program_id(1) == pl.num_programs(1) - 1)
    def _finalize():
        y = (acc_ref[...] * scale_ref[...] + shift_ref[...]
             + res_ref[...].astype(jnp.float32))
        o_ref[...] = y.astype(o_ref.dtype)


def _dw_s1_kernel(x_ref, w_ref, scale_ref, shift_ref, o_ref):
    """Stride-1 depthwise 3x3: 9 static halo taps sliced in-kernel + BN + ReLU6.

    x_ref: (1, H+2, W+2, C) padded image, w_ref: (9, C), o_ref: (1, H, W, C).
    """
    ho, wo = o_ref.shape[1], o_ref.shape[2]
    x = x_ref[...].astype(jnp.float32)
    w = w_ref[...]
    acc = None
    for kh in range(3):
        for kw in range(3):
            tap = x[:, kh:kh + ho, kw:kw + wo, :]
            term = tap * w[3 * kh + kw:3 * kh + kw + 1, :]
            acc = term if acc is None else acc + term
    y = acc * scale_ref[...] + shift_ref[...]
    o_ref[...] = jnp.clip(y, 0.0, 6.0).astype(o_ref.dtype)


def _dw_gather_kernel(p_ref, w_ref, scale_ref, shift_ref, o_ref):
    """Stride-2 fallback: 9 pre-gathered taps (tm, C) + BN affine + ReLU6."""
    w = w_ref[...]
    acc = p_ref[0].astype(jnp.float32) * w[0:1, :]
    for k in range(1, 9):
        acc = acc + p_ref[k].astype(jnp.float32) * w[k:k + 1, :]
    y = acc * scale_ref[...] + shift_ref[...]
    o_ref[...] = jnp.clip(y, 0.0, 6.0).astype(o_ref.dtype)


# --------------------------- Kernel wrappers ---------------------------------

def pointwise_matmul(x2d, w, scale, shift, *, activation=None, residual=None,
                     out_dtype=None):
    """y = act((x2d @ w) * scale + shift [+ residual]).  bf16 MXU, f32 accum."""
    M, c_in = x2d.shape
    c_out = w.shape[1]
    out_dtype = out_dtype if out_dtype is not None else x2d.dtype

    tm = _pick_tm(M, 512)
    mp = _round_up(M, tm)
    if c_in > 256:                       # K-tiled path (e.g. classifier flat_dim)
        tk = 256
        kp = _round_up(c_in, tk)
    else:
        tk, kp = c_in, c_in

    xb = x2d.astype(jnp.bfloat16)
    wb = w.astype(jnp.bfloat16)
    if mp != M or kp != c_in:
        xb = jnp.pad(xb, ((0, mp - M), (0, kp - c_in)))
    if kp != c_in:
        wb = jnp.pad(wb, ((0, kp - c_in), (0, 0)))

    scale2d = scale.reshape(1, c_out).astype(jnp.float32)
    shift2d = shift.reshape(1, c_out).astype(jnp.float32)

    grid = (mp // tm, kp // tk)
    x_spec = pl.BlockSpec((tm, tk), lambda i, k: (i, k))
    w_spec = pl.BlockSpec((tk, c_out), lambda i, k: (k, 0))
    v_spec = pl.BlockSpec((1, c_out), lambda i, k: (0, 0))
    o_spec = pl.BlockSpec((tm, c_out), lambda i, k: (i, 0))
    out_shape = jax.ShapeDtypeStruct((mp, c_out), out_dtype)
    cparams = pltpu.CompilerParams(
        dimension_semantics=("parallel", "arbitrary"),
        vmem_limit_bytes=_VMEM_LIMIT)
    scratch = [pltpu.VMEM((tm, c_out), jnp.float32)]

    if residual is None:
        out = pl.pallas_call(
            functools.partial(_mm_kernel, activation=activation),
            out_shape=out_shape, grid=grid,
            in_specs=[x_spec, w_spec, v_spec, v_spec],
            out_specs=o_spec, scratch_shapes=scratch,
            compiler_params=cparams,
        )(xb, wb, scale2d, shift2d)
    else:
        rb = residual.astype(jnp.bfloat16)
        if mp != M:
            rb = jnp.pad(rb, ((0, mp - M), (0, 0)))
        r_spec = pl.BlockSpec((tm, c_out), lambda i, k: (i, 0))
        out = pl.pallas_call(
            _mm_res_kernel,
            out_shape=out_shape, grid=grid,
            in_specs=[x_spec, w_spec, v_spec, v_spec, r_spec],
            out_specs=o_spec, scratch_shapes=scratch,
            compiler_params=cparams,
        )(xb, wb, scale2d, shift2d, rb)
    return out if mp == M else out[:M]


def depthwise_conv_bn_relu6(x, w9, scale, shift, stride):
    """3x3 depthwise conv (pad=1, given stride) + BN + ReLU6.  x: (N,H,W,C)."""
    N, H, W, C = x.shape
    xp = jnp.pad(x, ((0, 0), (1, 1), (1, 1), (0, 0)))
    Ho = (H - 1) // stride + 1
    Wo = (W - 1) // stride + 1
    scale2d = scale.reshape(1, C).astype(jnp.float32)
    shift2d = shift.reshape(1, C).astype(jnp.float32)
    cparams = pltpu.CompilerParams(dimension_semantics=("parallel",),
                                   vmem_limit_bytes=_VMEM_LIMIT)

    if stride == 1:
        # No (9, M, C) materialization: whole padded image per batch element,
        # the 9 taps are static slices inside the kernel.
        # TODO(synk): for large spatial sizes, switch to row-halo tiles (manual DMA).
        return pl.pallas_call(
            _dw_s1_kernel,
            out_shape=jax.ShapeDtypeStruct((N, Ho, Wo, C), x.dtype),
            grid=(N,),
            in_specs=[
                pl.BlockSpec((1, H + 2, W + 2, C), lambda b: (b, 0, 0, 0)),
                pl.BlockSpec((9, C), lambda b: (0, 0)),
                pl.BlockSpec((1, C), lambda b: (0, 0)),
                pl.BlockSpec((1, C), lambda b: (0, 0)),
            ],
            out_specs=pl.BlockSpec((1, Ho, Wo, C), lambda b: (b, 0, 0, 0)),
            compiler_params=cparams,
        )(xp, w9, scale2d, shift2d)

    # stride == 2: gather the 9 strided taps outside (bf16, ~2.25x input volume).
    # TODO(synk): move the strided taps in-kernel as well (strided pl.ds reads).
    patches = []
    for kh in range(3):
        for kw in range(3):
            sl = jax.lax.slice(
                xp,
                (0, kh, kw, 0),
                (N, kh + stride * (Ho - 1) + 1, kw + stride * (Wo - 1) + 1, C),
                (1, stride, stride, 1),
            )
            patches.append(sl.reshape(N * Ho * Wo, C))
    P = jnp.stack(patches, axis=0)                       # (9, M, C) bf16

    M = N * Ho * Wo
    tm = _pick_tm(M, 256)
    mp = _round_up(M, tm)
    if mp != M:
        P = jnp.pad(P, ((0, 0), (0, mp - M), (0, 0)))

    out = pl.pallas_call(
        _dw_gather_kernel,
        out_shape=jax.ShapeDtypeStruct((mp, C), x.dtype),
        grid=(mp // tm,),
        in_specs=[
            pl.BlockSpec((9, tm, C), lambda i: (0, i, 0)),
            pl.BlockSpec((9, C), lambda i: (0, 0)),
            pl.BlockSpec((1, C), lambda i: (0, 0)),
            pl.BlockSpec((1, C), lambda i: (0, 0)),
        ],
        out_specs=pl.BlockSpec((tm, C), lambda i: (i, 0)),
        compiler_params=cparams,
    )(P, w9, scale2d, shift2d)
    out = out if mp == M else out[:M]
    return out.reshape(N, Ho, Wo, C)


# --------------------------- Parameter construction --------------------------

def _bn_affine(channels):
    # gamma=1, beta=0, running_mean=0, running_var=1 (per init_params), eval mode.
    scale = jnp.full((channels,), 1.0 / math.sqrt(1.0 + _BN_EPS), jnp.float32)
    shift = jnp.zeros((channels,), jnp.float32)
    return scale, shift


def build_mobilenet_v2_params(key, c, h, w, inverted_residual_setting, fc_layers):
    keys = iter(jax.random.split(key, 4096))

    def conv_normal(shape, fan_out):
        # kaiming_normal_(mode='fan_out') -> N(0, sqrt(2/fan_out))
        std = math.sqrt(2.0 / fan_out)
        return jax.random.normal(next(keys), shape, jnp.float32) * std

    blocks = []
    input_channel = c
    new_h, new_w = h, w
    for t, co, n, s in inverted_residual_setting:
        new_h //= s
        new_w //= s
        for i in range(n):
            stride = s if i == 0 else 1
            inp, oup = input_channel, co
            hidden = int(round(inp * t))
            blk = {"stride": stride, "use_res": (stride == 1 and inp == oup)}
            if t != 1:
                # torch weight (hidden, inp, 1, 1); fan_out = hidden
                sc, sh = _bn_affine(hidden)
                blk["expand"] = {
                    "w": conv_normal((inp, hidden), hidden).astype(jnp.bfloat16),
                    "scale": sc, "shift": sh}
            # depthwise torch weight (hidden, 1, 3, 3); fan_out = hidden * 9
            sc, sh = _bn_affine(hidden)
            blk["dw"] = {
                "w": conv_normal((3, 3, hidden), hidden * 9).reshape(9, hidden),
                "scale": sc, "shift": sh}
            # projection torch weight (oup, hidden, 1, 1); fan_out = oup
            sc, sh = _bn_affine(oup)
            blk["project"] = {
                "w": conv_normal((hidden, oup), oup).astype(jnp.bfloat16),
                "scale": sc, "shift": sh}
            blocks.append(blk)
            input_channel = co

    flat_dim = new_h * new_w * input_channel
    fc_sizes = (flat_dim,) + tuple(fc_layers)
    classifier = []
    for i, (s1, s2) in enumerate(zip(fc_sizes[:-1], fc_sizes[1:])):
        wl = (jax.random.normal(next(keys), (s1, s2), jnp.float32) * 0.01)
        bl = jnp.zeros((s2,), jnp.float32)
        classifier.append({"w": wl.astype(jnp.bfloat16), "b": bl,
                           "last": i == len(fc_sizes) - 2})
    return {"blocks": blocks, "classifier": classifier, "flat_dim": flat_dim}


# --------------------------- Forward ------------------------------------------

def mobilenet_v2_forward(params, x_nchw):
    # NCHW (PyTorch) -> NHWC; activations carried in bf16 between kernels.
    x = jnp.transpose(x_nchw, (0, 2, 3, 1)).astype(jnp.bfloat16)

    for blk in params["blocks"]:
        inp_feat = x
        y = x
        if "expand" in blk:                      # 1x1 expand + BN + ReLU6
            N, H, W, Ci = y.shape
            e = blk["expand"]
            y = pointwise_matmul(y.reshape(N * H * W, Ci), e["w"],
                                 e["scale"], e["shift"], activation="relu6")
            y = y.reshape(N, H, W, e["w"].shape[1])

        d = blk["dw"]                            # 3x3 depthwise + BN + ReLU6
        y = depthwise_conv_bn_relu6(y, d["w"], d["scale"], d["shift"], blk["stride"])

        N, Ho, Wo, Ch = y.shape                  # 1x1 project + BN (+ residual)
        p = blk["project"]
        res = inp_feat.reshape(N * Ho * Wo, -1) if blk["use_res"] else None
        y = pointwise_matmul(y.reshape(N * Ho * Wo, Ch), p["w"],
                             p["scale"], p["shift"], activation=None, residual=res)
        x = y.reshape(N, Ho, Wo, p["w"].shape[1])

    # flatten exactly like PyTorch x.view(N, -1) on NCHW tensors
    N = x.shape[0]
    x = jnp.transpose(x, (0, 3, 1, 2)).reshape(N, -1)

    for layer in params["classifier"]:
        c_out = layer["w"].shape[1]
        if layer["last"]:
            # Linear + Identity (end_fn=nn.Identity)
            x = pointwise_matmul(x, layer["w"], jnp.ones((c_out,), jnp.float32),
                                 layer["b"], activation=None,
                                 out_dtype=jnp.float32)
        else:
            # Linear + ReLU + BatchNorm1d folded into the kernel's affine:
            # relu(u)*s + 0 == relu(u*s) since s > 0 and beta == 0, so
            # scale = bn_s, shift = bn_s * bias + bn_b.
            bn_s, bn_b = _bn_affine(c_out)
            x = pointwise_matmul(x, layer["w"], bn_s,
                                 bn_s * layer["b"] + bn_b, activation="relu")
    return x


# --------------------------- Demo ---------------------------------------------

if __name__ == "__main__":
    # Small, forward-consistent configuration:
    #   batch=2, c=4, h=w=16, reduced inverted-residual setting, 32->10 head
    #   (exercises stride-1/2 depthwise, residual blocks, K-tiled classifier
    #    matmul and the ReLU+BatchNorm1d fold).
    batch, c, h, w = 2, 4, 16, 16
    inverted_residual_setting = [
        [1, 8, 1, 1],    # t, c, n, s  (expand=1 path, no residual)
        [6, 16, 2, 2],   # stride-2 then stride-1 residual block
        [6, 24, 2, 2],   # stride-2 then stride-1 residual block
    ]
    fc_layers = (32, 10)

    root = jax.random.PRNGKey(0)
    k_params, k_x = jax.random.split(root)
    params = build_mobilenet_v2_params(k_params, c, h, w,
                                       inverted_residual_setting, fc_layers)

    x = jax.random.normal(k_x, (batch, c, h, w), jnp.float32)  # NCHW like PyTorch

    out = mobilenet_v2_forward(params, x)
    out = jax.block_until_ready(out)
    assert out.shape == (batch, fc_layers[-1]), out.shape
    assert bool(jnp.all(jnp.isfinite(out)))
    print("KERNEL_OK")
</pallas_src>

<mosaic_0001>
module attributes {stable_mosaic.version = 11 : i64} {
  func.func @_dw_s1_kernel(%arg0: i32, %arg1: memref<1x18x18x4xbf16, #tpu.memory_space<vmem>>, %arg2: memref<9x4xf32, #tpu.memory_space<vmem>>, %arg3: memref<1x4xf32, #tpu.memory_space<vmem>>, %arg4: memref<1x4xf32, #tpu.memory_space<vmem>>, %arg5: memref<1x16x16x4xbf16, #tpu.memory_space<vmem>>) attributes {dimension_semantics = [#tpu.dimension_semantics<parallel>], iteration_bounds = array<i64: 2>, scalar_prefetch = 0 : i64, scratch_operands = 0 : i64, tpu.core_type = #tpu.core_type<tc>, window_params = [{transform_indices = @transform_0, window_bounds = array<i64: 1, 18, 18, 4>}, {pipeline_mode = #tpu.pipeline_mode<synchronous>, transform_indices = @transform_1, window_bounds = array<i64: 9, 4>}, {pipeline_mode = #tpu.pipeline_mode<synchronous>, transform_indices = @transform_2, window_bounds = array<i64: 1, 4>}, {pipeline_mode = #tpu.pipeline_mode<synchronous>, transform_indices = @transform_3, window_bounds = array<i64: 1, 4>}, {transform_indices = @transform_4, window_bounds = array<i64: 1, 16, 16, 4>}]} {
    %c0 = arith.constant 0 : index
    %c0_0 = arith.constant 0 : index
    %c0_1 = arith.constant 0 : index
    %c0_2 = arith.constant 0 : index
    %0 = vector.load %arg1[%c0, %c0_0, %c0_1, %c0_2] : memref<1x18x18x4xbf16, #tpu.memory_space<vmem>>, vector<1x18x18x4xbf16>
    %1 = arith.extf %0 : vector<1x18x18x4xbf16> to vector<1x18x18x4xf32>
    %c0_3 = arith.constant 0 : index
    %c0_4 = arith.constant 0 : index
    %2 = vector.load %arg2[%c0_3, %c0_4] : memref<9x4xf32, #tpu.memory_space<vmem>>, vector<9x4xf32>
    %3 = vector.extract_strided_slice %1 {offsets = [0, 0, 0, 0], sizes = [1, 16, 16, 4], strides = [1, 1, 1, 1]} : vector<1x18x18x4xf32> to vector<1x16x16x4xf32>
    %4 = vector.extract_strided_slice %2 {offsets = [0, 0], sizes = [1, 4], strides = [1, 1]} : vector<9x4xf32> to vector<1x4xf32>
    %5 = vector.shape_cast %4 : vector<1x4xf32> to vector<1x1x1x4xf32>
    %6 = vector.broadcast %5 : vector<1x1x1x4xf32> to vector<1x16x16x4xf32>
    %7 = arith.mulf %3, %6 : vector<1x16x16x4xf32>
    %8 = vector.extract_strided_slice %1 {offsets = [0, 0, 1, 0], sizes = [1, 16, 16, 4], strides = [1, 1, 1, 1]} : vector<1x18x18x4xf32> to vector<1x16x16x4xf32>
    %9 = vector.extract_strided_slice %2 {offsets = [1, 0], sizes = [1, 4], strides = [1, 1]} : vector<9x4xf32> to vector<1x4xf32>
    %10 = vector.shape_cast %9 : vector<1x4xf32> to vector<1x1x1x4xf32>
    %11 = vector.broadcast %10 : vector<1x1x1x4xf32> to vector<1x16x16x4xf32>
    %12 = arith.mulf %8, %11 : vector<1x16x16x4xf32>
    %13 = arith.addf %7, %12 : vector<1x16x16x4xf32>
    %14 = vector.extract_strided_slice %1 {offsets = [0, 0, 2, 0], sizes = [1, 16, 16, 4], strides = [1, 1, 1, 1]} : vector<1x18x18x4xf32> to vector<1x16x16x4xf32>
    %15 = vector.extract_strided_slice %2 {offsets = [2, 0], sizes = [1, 4], strides = [1, 1]} : vector<9x4xf32> to vector<1x4xf32>
    %16 = vector.shape_cast %15 : vector<1x4xf32> to vector<1x1x1x4xf32>
    %17 = vector.broadcast %16 : vector<1x1x1x4xf32> to vector<1x16x16x4xf32>
    %18 = arith.mulf %14, %17 : vector<1x16x16x4xf32>
    %19 = arith.addf %13, %18 : vector<1x16x16x4xf32>
    %20 = vector.extract_strided_slice %1 {offsets = [0, 1, 0, 0], sizes = [1, 16, 16, 4], strides = [1, 1, 1, 1]} : vector<1x18x18x4xf32> to vector<1x16x16x4xf32>
    %21 = vector.extract_strided_slice %2 {offsets = [3, 0], sizes = [1, 4], strides = [1, 1]} : vector<9x4xf32> to vector<1x4xf32>
    %22 = vector.shape_cast %21 : vector<1x4xf32> to vector<1x1x1x4xf32>
    %23 = vector.broadcast %22 : vector<1x1x1x4xf32> to vector<1x16x16x4xf32>
    %24 = arith.mulf %20, %23 : vector<1x16x16x4xf32>
    %25 = arith.addf %19, %24 : vector<1x16x16x4xf32>
    %26 = vector.extract_strided_slice %1 {offsets = [0, 1, 1, 0], sizes = [1, 16, 16, 4], strides = [1, 1, 1, 1]} : vector<1x18x18x4xf32> to vector<1x16x16x4xf32>
    %27 = vector.extract_strided_slice %2 {offsets = [4, 0], sizes = [1, 4], strides = [1, 1]} : vector<9x4xf32> to vector<1x4xf32>
    %28 = vector.shape_cast %27 : vector<1x4xf32> to vector<1x1x1x4xf32>
    %29 = vector.broadcast %28 : vector<1x1x1x4xf32> to vector<1x16x16x4xf32>
    %30 = arith.mulf %26, %29 : vector<1x16x16x4xf32>
    %31 = arith.addf %25, %30 : vector<1x16x16x4xf32>
    %32 = vector.extract_strided_slice %1 {offsets = [0, 1, 2, 0], sizes = [1, 16, 16, 4], strides = [1, 1, 1, 1]} : vector<1x18x18x4xf32> to vector<1x16x16x4xf32>
    %33 = vector.extract_strided_slice %2 {offsets = [5, 0], sizes = [1, 4], strides = [1, 1]} : vector<9x4xf32> to vector<1x4xf32>
    %34 = vector.shape_cast %33 : vector<1x4xf32> to vector<1x1x1x4xf32>
    %35 = vector.broadcast %34 : vector<1x1x1x4xf32> to vector<1x16x16x4xf32>
    %36 = arith.mulf %32, %35 : vector<1x16x16x4xf32>
    %37 = arith.addf %31, %36 : vector<1x16x16x4xf32>
    %38 = vector.extract_strided_slice %1 {offsets = [0, 2, 0, 0], sizes = [1, 16, 16, 4], strides = [1, 1, 1, 1]} : vector<1x18x18x4xf32> to vector<1x16x16x4xf32>
    %39 = vector.extract_strided_slice %2 {offsets = [6, 0], sizes = [1, 4], strides = [1, 1]} : vector<9x4xf32> to vector<1x4xf32>
    %40 = vector.shape_cast %39 : vector<1x4xf32> to vector<1x1x1x4xf32>
    %41 = vector.broadcast %40 : vector<1x1x1x4xf32> to vector<1x16x16x4xf32>
    %42 = arith.mulf %38, %41 : vector<1x16x16x4xf32>
    %43 = arith.addf %37, %42 : vector<1x16x16x4xf32>
    %44 = vector.extract_strided_slice %1 {offsets = [0, 2, 1, 0], sizes = [1, 16, 16, 4], strides = [1, 1, 1, 1]} : vector<1x18x18x4xf32> to vector<1x16x16x4xf32>
    %45 = vector.extract_strided_slice %2 {offsets = [7, 0], sizes = [1, 4], strides = [1, 1]} : vector<9x4xf32> to vector<1x4xf32>
    %46 = vector.shape_cast %45 : vector<1x4xf32> to vector<1x1x1x4xf32>
    %47 = vector.broadcast %46 : vector<1x1x1x4xf32> to vector<1x16x16x4xf32>
    %48 = arith.mulf %44, %47 : vector<1x16x16x4xf32>
    %49 = arith.addf %43, %48 : vector<1x16x16x4xf32>
    %50 = vector.extract_strided_slice %1 {offsets = [0, 2, 2, 0], sizes = [1, 16, 16, 4], strides = [1, 1, 1, 1]} : vector<1x18x18x4xf32> to vector<1x16x16x4xf32>
    %51 = vector.extract_strided_slice %2 {offsets = [8, 0], sizes = [1, 4], strides = [1, 1]} : vector<9x4xf32> to vector<1x4xf32>
    %52 = vector.shape_cast %51 : vector<1x4xf32> to vector<1x1x1x4xf32>
    %53 = vector.broadcast %52 : vector<1x1x1x4xf32> to vector<1x16x16x4xf32>
    %54 = arith.mulf %50, %53 : vector<1x16x16x4xf32>
    %55 = arith.addf %49, %54 : vector<1x16x16x4xf32>
    %c0_5 = arith.constant 0 : index
    %c0_6 = arith.constant 0 : index
    %56 = vector.load %arg3[%c0_5, %c0_6] : memref<1x4xf32, #tpu.memory_space<vmem>>, vector<1x4xf32>
    %57 = vector.shape_cast %56 : vector<1x4xf32> to vector<1x1x1x4xf32>
    %58 = vector.broadcast %57 : vector<1x1x1x4xf32> to vector<1x16x16x4xf32>
    %59 = arith.mulf %55, %58 : vector<1x16x16x4xf32>
    %c0_7 = arith.constant 0 : index
    %c0_8 = arith.constant 0 : index
    %60 = vector.load %arg4[%c0_7, %c0_8] : memref<1x4xf32, #tpu.memory_space<vmem>>, vector<1x4xf32>
    %61 = vector.shape_cast %60 : vector<1x4xf32> to vector<1x1x1x4xf32>
    %62 = vector.broadcast %61 : vector<1x1x1x4xf32> to vector<1x16x16x4xf32>
    %63 = arith.addf %59, %62 : vector<1x16x16x4xf32>
    %cst = arith.constant 0.000000e+00 : f32
    %cst_9 = arith.constant 6.000000e+00 : f32
    %64 = vector.broadcast %cst : f32 to vector<1x16x16x4xf32>
    %65 = arith.maximumf %64, %63 : vector<1x16x16x4xf32>
    %66 = vector.broadcast %cst_9 : f32 to vector<1x16x16x4xf32>
    %67 = arith.minimumf %66, %65 : vector<1x16x16x4xf32>
    %68 = arith.truncf %67 : vector<1x16x16x4xf32> to vector<1x16x16x4xbf16>
    %c0_10 = arith.constant 0 : index
    %c0_11 = arith.constant 0 : index
    %c0_12 = arith.constant 0 : index
    %c0_13 = arith.constant 0 : index
    %69 = vector.load %arg5[%c0_10, %c0_11, %c0_12, %c0_13] : memref<1x16x16x4xbf16, #tpu.memory_space<vmem>>, vector<1x16x16x4xbf16>
    tpu.vector_store %arg5[%c0_10, %c0_11, %c0_12, %c0_13], %68 {strides = array<i32>} : memref<1x16x16x4xbf16, #tpu.memory_space<vmem>>, vector<1x16x16x4xbf16>,
    return
  }
  func.func @transform_0(%arg0: i32) -> (i32, i32, i32, i32) {
    %c0_i32 = arith.constant 0 : i32
    %c0_i32_0 = arith.constant 0 : i32
    %c0_i32_1 = arith.constant 0 : i32
    %c0_i32_2 = arith.constant 0 : i32
    return %arg0, %c0_i32, %c0_i32_0, %c0_i32_1 : i32, i32, i32, i32
  }
  func.func @transform_1(%arg0: i32) -> (i32, i32) {
    %c0_i32 = arith.constant 0 : i32
    %c0_i32_0 = arith.constant 0 : i32
    %c0_i32_1 = arith.constant 0 : i32
    return %c0_i32, %c0_i32_0 : i32, i32
  }
  func.func @transform_2(%arg0: i32) -> (i32, i32) {
    %c0_i32 = arith.constant 0 : i32
    %c0_i32_0 = arith.constant 0 : i32
    %c0_i32_1 = arith.constant 0 : i32
    return %c0_i32, %c0_i32_0 : i32, i32
  }
  func.func @transform_3(%arg0: i32) -> (i32, i32) {
    %c0_i32 = arith.constant 0 : i32
    %c0_i32_0 = arith.constant 0 : i32
    %c0_i32_1 = arith.constant 0 : i32
    return %c0_i32, %c0_i32_0 : i32, i32
  }
  func.func @transform_4(%arg0: i32) -> (i32, i32, i32, i32) {
    %c0_i32 = arith.constant 0 : i32
    %c0_i32_0 = arith.constant 0 : i32
    %c0_i32_1 = arith.constant 0 : i32
    %c0_i32_2 = arith.constant 0 : i32
    return %arg0, %c0_i32, %c0_i32_0, %c0_i32_1 : i32, i32, i32, i32
  }
}

</mosaic_0001>

<llo_original>
// kernel: tpu_custom_call.1
$region0: #{tpu_custom_call.1}
  #allocation0 [shape = 'u32[]', space=smem, size = 0x4, offset = 0x4, fixed_abs, tag = 'smem constant byte address 0x4 - core index']
  #allocation1 [shape = 'u32[144,128]{1,0:T(1,128)}', space=vmem, size = 0x12000, scoped, tag = 'internal scratch']
  %s0 = inlined_call_operand.vmem [shape: bf16[2,18,18,4], index: 0, kind: input, shape index: {}]
  %s1 = inlined_call_operand.vmem [shape: f32[9,4], index: 1, kind: input, shape index: {}]
  %s2 = inlined_call_operand.vmem [shape: f32[1,4], index: 2, kind: input, shape index: {}]
  %s3 = inlined_call_operand.vmem [shape: f32[1,4], index: 3, kind: input, shape index: {}]
  %s4 = inlined_call_operand.vmem [shape: bf16[2,16,16,4], index: 4, kind: output, shape index: {}]
  %s5 = sld [smem:[#allocation0]]
  $region49: #{tpu_custom_call.1} parent=0
    _
  %s7 = ssub.s32 1, %s5
  %s8 = scalar_select 0, %s7, %s5
  loop: start=0, step=1, limit=4
  $region2: #{tpu_custom_call.1} parent=0 // loop_pre_header
    _
  $region3: #{tpu_custom_call.1} parent=0 // loop_header
    %s10 = sphi 0, %s14
    %p11 = scmp.ge.s32.totalorder %s10, 4
    %s20 = sphi 0, %s22
    %s23 = sphi 0, %s20
    %s24 = sphi 0, %s23
    %s40 = sphi 0, %s24
    %s44 = sphi 0, %s44
    %s46 = sphi 0, %s44
    %s47 = sphi 0, %s46
    %s61 = sphi 0, %s47
    %s65 = sphi 0, %s65
    %s67 = sphi 0, %s65
    %s68 = sphi 0, %s67
    %s82 = sphi 0, %s68
    %s86 = sphi 0, %s86
    %s88 = sphi 0, %s86
    %s89 = sphi 0, %s88
    %s103 = sphi 0, %s89
    %s109 = sphi 0, %s111
    %s112 = sphi 0, %s109
    %s113 = sphi 0, %s112
    %s129 = sphi 0, %s113
  $region4: #{tpu_custom_call.1} parent=0 // loop_header_branch
    %13 = sbr.rel (%p11) target = $region8
  $region5: #{tpu_custom_call.1} parent=0 // loop_body
    %s15 = ssub.s32 %s10, 1
    %s16 = ssub.s32 %s10, 2
    %s17 = sadd.s32 %s10, 1
    %s18 = ssub.s32 %s10, %s17
    %p19 = scmp.eq.s32.totalorder %s18, 0
    %s21 = sadd.s32 %s20, 1
    %s22 = scalar_select %p19, %s20, %s21
    %p25 = pneg %p19
    %p26 = scmp.eq.s32.totalorder %s10, 1
    %p27 = por %p25, %p26
    %p28 = scmp.ne.s32.totalorder %s20, %s23
    %p29 = scmp.eq.s32.totalorder %s10, 0
    %p30 = por %p28, %p29
    %p31 = scmp.ne.s32.totalorder %s20, %s23
    %p32 = scmp.eq.s32.totalorder %s15, 1
    %p33 = por %p31, %p32
    %p34 = scmp.ne.s32.totalorder %s23, %s24
    %p35 = scmp.eq.s32.totalorder %s15, 0
    %p36 = por %p34, %p35
    %p37 = scmp.ne.s32.totalorder %s23, %s24
    %p38 = scmp.eq.s32.totalorder %s16, 1
    %p39 = por %p37, %p38
    %p41 = scmp.ne.s32.totalorder %s24, %s40
    %p42 = scmp.eq.s32.totalorder %s16, 0
    %p43 = por %p41, %p42
    %s45 = sadd.s32 %s44, 1
    %p48 = scmp.eq.s32.totalorder %s10, 1
    %p49 = scmp.ne.s32.totalorder %s44, %s46
    %p50 = scmp.eq.s32.totalorder %s10, 0
    %p51 = por %p49, %p50
    %p52 = scmp.ne.s32.totalorder %s44, %s46
    %p53 = scmp.eq.s32.totalorder %s15, 1
    %p54 = por %p52, %p53
    %p55 = scmp.ne.s32.totalorder %s46, %s47
    %p56 = scmp.eq.s32.totalorder %s15, 0
    %p57 = por %p55, %p56
    %p58 = scmp.ne.s32.totalorder %s46, %s47
    %p59 = scmp.eq.s32.totalorder %s16, 1
    %p60 = por %p58, %p59
    %p62 = scmp.ne.s32.totalorder %s47, %s61
    %p63 = scmp.eq.s32.totalorder %s16, 0
    %p64 = por %p62, %p63
    %s66 = sadd.s32 %s65, 1
    %p69 = scmp.eq.s32.totalorder %s10, 1
    %p70 = scmp.ne.s32.totalorder %s65, %s67
    %p71 = scmp.eq.s32.totalorder %s10, 0
    %p72 = por %p70, %p71
    %p73 = scmp.ne.s32.totalorder %s65, %s67
    %p74 = scmp.eq.s32.totalorder %s15, 1
    %p75 = por %p73, %p74
    %p76 = scmp.ne.s32.totalorder %s67, %s68
    %p77 = scmp.eq.s32.totalorder %s15, 0
    %p78 = por %p76, %p77
    %p79 = scmp.ne.s32.totalorder %s67, %s68
    %p80 = scmp.eq.s32.totalorder %s16, 1
    %p81 = por %p79, %p80
    %p83 = scmp.ne.s32.totalorder %s68, %s82
    %p84 = scmp.eq.s32.totalorder %s16, 0
    %p85 = por %p83, %p84
    %s87 = sadd.s32 %s86, 1
    %p90 = scmp.eq.s32.totalorder %s10, 1
    %p91 = scmp.ne.s32.totalorder %s86, %s88
    %p92 = scmp.eq.s32.totalorder %s10, 0
    %p93 = por %p91, %p92
    %p94 = scmp.ne.s32.totalorder %s86, %s88
    %p95 = scmp.eq.s32.totalorder %s15, 1
    %p96 = por %p94, %p95
    %p97 = scmp.ne.s32.totalorder %s88, %s89
    %p98 = scmp.eq.s32.totalorder %s15, 0
    %p99 = por %p97, %p98
    %p100 = scmp.ne.s32.totalorder %s88, %s89
    %p101 = scmp.eq.s32.totalorder %s16, 1
    %p102 = por %p100, %p101
    %p104 = scmp.ne.s32.totalorder %s89, %s103
    %p105 = scmp.eq.s32.totalorder %s16, 0
    %p106 = por %p104, %p105
    %s107 = ssub.s32 %s10, %s17
    %p108 = scmp.eq.s32.totalorder %s107, 0
    %s110 = sadd.s32 %s109, 1
    %s111 = scalar_select %p108, %s109, %s110
    %p114 = pneg %p108
    %p115 = scmp.eq.s32.totalorder %s10, 1
    %p116 = por %p114, %p115
    %p117 = scmp.ne.s32.totalorder %s109, %s112
    %p118 = scmp.eq.s32.totalorder %s10, 0
    %p119 = por %p117, %p118
    %p120 = scmp.ne.s32.totalorder %s109, %s112
    %p121 = scmp.eq.s32.totalorder %s15, 1
    %p122 = por %p120, %p121
    %p123 = scmp.ne.s32.totalorder %s112, %s113
    %p124 = scmp.eq.s32.totalorder %s15, 0
    %p125 = por %p123, %p124
    %p126 = scmp.ne.s32.totalorder %s112, %s113
    %p127 = scmp.eq.s32.totalorder %s16, 1
    %p128 = por %p126, %p127
    %p130 = scmp.ne.s32.totalorder %s113, %s129
    %p131 = scmp.eq.s32.totalorder %s16, 0
    %p132 = por %p130, %p131
    %p133 = scmp.le.s32.totalorder 1, %s10
    %p134 = scmp.lt.s32.totalorder %s10, 3
    %p135 = pnand %p133, %p134
    %p136 = pneg %p135
    // Predicated region
    $region9: #{tpu_custom_call.1} parent=5 // pred_check
      _
    $region10: #{tpu_custom_call.1} parent=5 // pred_check_branch
      %138 = sbr.rel (%p135) target = $region12
    $region11: #{tpu_custom_call.1} parent=5 // pred_region
      %s139 = ssub.s32 %s10, 1
      // Predicated region
      $region13: #{tpu_custom_call.1} parent=11 // pred_check
        %p140 = pneg %p57
      $region14: #{tpu_custom_call.1} parent=11 // pred_check_branch
        %142 = sbr.rel (%p140) target = $region16
      $region15: #{tpu_custom_call.1} parent=11 // pred_region
        _
      $region16: #{tpu_custom_call.1} parent=11 // pred_fallthru
        _
      // Predicated region
      $region17: #{tpu_custom_call.1} parent=11 // pred_check
        %p143 = pneg %p78
      $region18: #{tpu_custom_call.1} parent=11 // pred_check_branch
        %145 = sbr.rel (%p143) target = $region20
      $region19: #{tpu_custom_call.1} parent=11 // pred_region
        _
      $region20: #{tpu_custom_call.1} parent=11 // pred_fallthru
        _
      // Predicated region
      $region21: #{tpu_custom_call.1} parent=11 // pred_check
        %p146 = pneg %p99
      $region22: #{tpu_custom_call.1} parent=11 // pred_check_branch
        %148 = sbr.rel (%p146) target = $region24
      $region23: #{tpu_custom_call.1} parent=11 // pred_region
        _
      $region24: #{tpu_custom_call.1} parent=11 // pred_fallthru
        _
    $region12: #{tpu_custom_call.1} parent=5 // pred_fallthru
      _
    %p149 = scmp.lt.s32.totalorder %s10, 2
    // Predicated region
    $region25: #{tpu_custom_call.1} parent=5 // pred_check
      %p150 = pneg %p149
    $region26: #{tpu_custom_call.1} parent=5 // pred_check_branch
      %152 = sbr.rel (%p150) target = $region28
    $region27: #{tpu_custom_call.1} parent=5 // pred_region
      // Predicated region
      $region29: #{tpu_custom_call.1} parent=27 // pred_check
        %p153 = pneg %p30
      $region30: #{tpu_custom_call.1} parent=27 // pred_check_branch
        %155 = sbr.rel (%p153) target = $region32
      $region31: #{tpu_custom_call.1} parent=27 // pred_region
        %p156 = scmp.lt.s32.totalorder %s10, 1
        %s157 = scalar_select %p156, %s10, 1
        %s158 = smul.addr %s157, 54
        %s159 = smul.addr %s158, 4
        %s160 = scalar_lea.vmem %s0, %s159
      $region32: #{tpu_custom_call.1} parent=27 // pred_fallthru
        _
    $region28: #{tpu_custom_call.1} parent=5 // pred_fallthru
      _
    %p161 = scmp.le.s32.totalorder 1, %s10
    %p162 = scmp.lt.s32.totalorder %s10, 3
    %p163 = pnand %p161, %p162
    %p164 = pneg %p163
    // Predicated region
    $region33: #{tpu_custom_call.1} parent=5 // pred_check
      _
    $region34: #{tpu_custom_call.1} parent=5 // pred_check_branch
      %166 = sbr.rel (%p163) target = $region36
    $region35: #{tpu_custom_call.1} parent=5 // pred_region
      %s167 = ssub.s32 %s10, 1
      %p168 = scmp.lt.s32.totalorder %s15, 1
      %s169 = scalar_select %p168, %s15, 1
      %s170 = smul.addr %s169, 54
      %s171 = smul.addr %s170, 4
      %s172 = scalar_lea.vmem %s0, %s171
      %p173 = pneg %p36
      %p174 = pneg %p33
      %p175 = pneg %p57
      %p176 = pneg %p54
      %p177 = pneg %p78
      %p178 = pneg %p75
      %p179 = pneg %p99
      %p180 = pneg %p96
      %p181 = pneg %p125
      %p182 = pneg %p122
      %p183 = scmp.lt.s32.totalorder %s15, 1
      %s184 = scalar_select %p183, %s15, 1
      %s185 = smul.addr %s184, 32
      %s186 = smul.addr %s185, 4
      %s187 = scalar_lea.vmem %s4, %s186
      %p188 = scmp.lt.s32.totalorder %s15, 1
      %s189 = scalar_select %p188, %s15, 1
      %s190 = smul.addr %s189, 54
      %s191 = smul.addr %s190, 4
      %s192 = scalar_lea.vmem %s0, %s191
      %p193 = scmp.lt.s32.totalorder %s15, 1
      %s194 = scalar_select %p193, %s15, 1
      %s195 = smul.addr %s194, 32
      %s196 = smul.addr %s195, 4
      %s197 = scalar_lea.vmem %s4, %s196
      %v198 = vld [vmem:[%s192] sm:$0xf]
      %v199 = vld [vmem:[%s192 + $0x4] sm:$0xf]
      %v200 = vld [vmem:[%s192 + $0x8] sm:$0x1]
      %v201 = vld [vmem:[%s192 + $0xc] sm:$0xf]
      %v202 = vld [vmem:[%s192 + $0x10] sm:$0xf]
      %v203 = vld [vmem:[%s192 + $0x14] sm:$0x1]
      %v204 = vld [vmem:[%s192 + $0x18] sm:$0xf]
      %v205 = vld [vmem:[%s192 + $0x1c] sm:$0xf]
      %v206 = vld [vmem:[%s192 + $0x20] sm:$0x1]
      %v207 = vld [vmem:[%s192 + $0x24] sm:$0xf]
      %v208 = vld [vmem:[%s192 + $0x28] sm:$0xf]
      %v209 = vld [vmem:[%s192 + $0x2c] sm:$0x1]
      %v210 = vld [vmem:[%s192 + $0x30] sm:$0xf]
      %v211 = vld [vmem:[%s192 + $0x34] sm:$0xf]
      %v212 = vld [vmem:[%s192 + $0x38] sm:$0x1]
      %v213 = vld [vmem:[%s192 + $0x3c] sm:$0xf]
      %v214 = vld [vmem:[%s192 + $0x40] sm:$0xf]
      %v215 = vld [vmem:[%s192 + $0x44] sm:$0x1]
      %v216 = vld [vmem:[%s192 + $0x48] sm:$0xf]
      %v217 = vld [vmem:[%s192 + $0x4c] sm:$0xf]
      %v218 = vld [vmem:[%s192 + $0x50] sm:$0x1]
      %v219 = vld [vmem:[%s192 + $0x54] sm:$0xf]
      %v220 = vld [vmem:[%s192 + $0x58] sm:$0xf]
      %v221 = vld [vmem:[%s192 + $0x5c] sm:$0x1]
      %v222 = vld [vmem:[%s192 + $0x60] sm:$0xf]
      %v223 = vld [vmem:[%s192 + $0x64] sm:$0xf]
      %v224 = vld [vmem:[%s192 + $0x68] sm:$0x1]
      %v225 = vld [vmem:[%s192 + $0x6c] sm:$0xf]
      %v226 = vld [vmem:[%s192 + $0x70] sm:$0xf]
      %v227 = vld [vmem:[%s192 + $0x74] sm:$0x1]
      %v228 = vld [vmem:[%s192 + $0x78] sm:$0xf]
      %v229 = vld [vmem:[%s192 + $0x7c] sm:$0xf]
      %v230 = vld [vmem:[%s192 + $0x80] sm:$0x1]
      %v231 = vld [vmem:[%s192 + $0x84] sm:$0xf]
      %v232 = vld [vmem:[%s192 + $0x88] sm:$0xf]
      %v233 = vld [vmem:[%s192 + $0x8c] sm:$0x1]
      %v234 = vld [vmem:[%s192 + $0x90] sm:$0xf]
      %v235 = vld [vmem:[%s192 + $0x94] sm:$0xf]
      %v236 = vld [vmem:[%s192 + $0x98] sm:$0x1]
      %v237 = vld [vmem:[%s192 + $0x9c] sm:$0xf]
      %v238 = vld [vmem:[%s192 + $0xa0] sm:$0xf]
      %v239 = vld [vmem:[%s192 + $0xa4] sm:$0x1]
      %v240 = vld [vmem:[%s192 + $0xa8] sm:$0xf]
      %v241 = vld [vmem:[%s192 + $0xac] sm:$0xf]
      %v242 = vld [vmem:[%s192 + $0xb0] sm:$0x1]
      %v243 = vld [vmem:[%s192 + $0xb4] sm:$0xf]
      %v244 = vld [vmem:[%s192 + $0xb8] sm:$0xf]
      %v245 = vld [vmem:[%s192 + $0xbc] sm:$0x1]
      %v246 = vld [vmem:[%s192 + $0xc0] sm:$0xf]
      %v247 = vld [vmem:[%s192 + $0xc4] sm:$0xf]
      %v248 = vld [vmem:[%s192 + $0xc8] sm:$0x1]
      %v249 = vld [vmem:[%s192 + $0xcc] sm:$0xf]
      %v250 = vld [vmem:[%s192 + $0xd0] sm:$0xf]
      %v251 = vld [vmem:[%s192 + $0xd4] sm:$0x1]
      %v252 = vunpack.c.l.bf16 %v198
      %v253 = vunpack.c.l.bf16 %v199
      %v254 = vunpack.c.l.bf16 %v200
      %v255 = vunpack.c.l.bf16 %v201
      %v256 = vunpack.c.l.bf16 %v202
      %v257 = vunpack.c.l.bf16 %v203
      %v258 = vunpack.c.l.bf16 %v204
      %v259 = vunpack.c.l.bf16 %v205
      %v260 = vunpack.c.l.bf16 %v206
      %v261 = vunpack.c.l.bf16 %v207
      %v262 = vunpack.c.l.bf16 %v208
      %v263 = vunpack.c.l.bf16 %v209
      %v264 = vunpack.c.l.bf16 %v210
      %v265 = vunpack.c.l.bf16 %v211
      %v266 = vunpack.c.l.bf16 %v212
      %v267 = vunpack.c.l.bf16 %v213
      %v268 = vunpack.c.l.bf16 %v214
      %v269 = vunpack.c.l.bf16 %v215
      %v270 = vunpack.c.l.bf16 %v216
      %v271 = vunpack.c.l.bf16 %v217
      %v272 = vunpack.c.l.bf16 %v218
      %v273 = vunpack.c.l.bf16 %v219
      %v274 = vunpack.c.l.bf16 %v220
      %v275 = vunpack.c.l.bf16 %v221
      %v276 = vunpack.c.l.bf16 %v222
      %v277 = vunpack.c.l.bf16 %v223
      %v278 = vunpack.c.l.bf16 %v224
      %v279 = vunpack.c.l.bf16 %v225
      %v280 = vunpack.c.l.bf16 %v226
      %v281 = vunpack.c.l.bf16 %v227
      %v282 = vunpack.c.l.bf16 %v228
      %v283 = vunpack.c.l.bf16 %v229
      %v284 = vunpack.c.l.bf16 %v230
      %v285 = vunpack.c.l.bf16 %v231
      %v286 = vunpack.c.l.bf16 %v232
      %v287 = vunpack.c.l.bf16 %v233
      %v288 = vunpack.c.l.bf16 %v234
      %v289 = vunpack.c.l.bf16 %v235
      %v290 = vunpack.c.l.bf16 %v236
      %v291 = vunpack.c.l.bf16 %v237
      %v292 = vunpack.c.l.bf16 %v238
      %v293 = vunpack.c.l.bf16 %v239
      %v294 = vunpack.c.l.bf16 %v240
      %v295 = vunpack.c.l.bf16 %v241
      %v296 = vunpack.c.l.bf16 %v242
      %v297 = vunpack.c.l.bf16 %v243
      %v298 = vunpack.c.l.bf16 %v244
      %v299 = vunpack.c.l.bf16 %v245
      %v300 = vunpack.c.l.bf16 %v246
      %v301 = vunpack.c.l.bf16 %v247
      %v302 = vunpack.c.l.bf16 %v248
      %v303 = vunpack.c.l.bf16 %v249
      %v304 = vunpack.c.l.bf16 %v250
      %v305 = vunpack.c.l.bf16 %v251
      %v306 = vld [vmem:[%s1] sm:$0xff]
      %v307 = vld [vmem:[%s1 + $0x8] sm:$0x1]
      %v308 = vlaneseq
      %v309 = vshrl.u32 %v308, 7
      %v310 = vsub.s32 0, %v309
      %v311 = vrot.slane %v306, %v310
      %v312 = vmul.f32 %v252, %v311
      %v313 = vmul.f32 %v253, %v311
      %v314 = vmul.f32 %v255, %v311
      %v315 = vmul.f32 %v256, %v311
      %v316 = vmul.f32 %v258, %v311
      %v317 = vmul.f32 %v259, %v311
      %v318 = vmul.f32 %v261, %v311
      %v319 = vmul.f32 %v262, %v311
      %v320 = vmul.f32 %v264, %v311
      %v321 = vmul.f32 %v265, %v311
      %v322 = vmul.f32 %v267, %v311
      %v323 = vmul.f32 %v268, %v311
      %v324 = vmul.f32 %v270, %v311
      %v325 = vmul.f32 %v271, %v311
      %v326 = vmul.f32 %v273, %v311
      %v327 = vmul.f32 %v274, %v311
      %v328 = vmul.f32 %v276, %v311
      %v329 = vmul.f32 %v277, %v311
      %v330 = vmul.f32 %v279, %v311
      %v331 = vmul.f32 %v280, %v311
      %v332 = vmul.f32 %v282, %v311
      %v333 = vmul.f32 %v283, %v311
      %v334 = vmul.f32 %v285, %v311
      %v335 = vmul.f32 %v286, %v311
      %v336 = vmul.f32 %v288, %v311
      %v337 = vmul.f32 %v289, %v311
      %v338 = vmul.f32 %v291, %v311
      %v339 = vmul.f32 %v292, %v311
      %v340 = vmul.f32 %v294, %v311
      %v341 = vmul.f32 %v295, %v311
      %v342 = vmul.f32 %v297, %v311
      %v343 = vmul.f32 %v298, %v311
      %v344 = vlaneseq
      %v345 = vshrl.u32 %v344, 7
      %v346 = vsub.s32 1, %v345
      %v347 = vrot.slane %v306, %v346
      %v348 = vmul.f32 %v252, %v347
      %v349 = vmul.f32 %v253, %v347
      %v350 = vmul.f32 %v254, %v347
      %v351 = vmul.f32 %v255, %v347
      %v352 = vmul.f32 %v256, %v347
      %v353 = vmul.f32 %v257, %v347
      %v354 = vmul.f32 %v258, %v347
      %v355 = vmul.f32 %v259, %v347
      %v356 = vmul.f32 %v260, %v347
      %v357 = vmul.f32 %v261, %v347
      %v358 = vmul.f32 %v262, %v347
      %v359 = vmul.f32 %v263, %v347
      %v360 = vmul.f32 %v264, %v347
      %v361 = vmul.f32 %v265, %v347
      %v362 = vmul.f32 %v266, %v347
      %v363 = vmul.f32 %v267, %v347
      %v364 = vmul.f32 %v268, %v347
      %v365 = vmul.f32 %v269, %v347
      %v366 = vmul.f32 %v270, %v347
      %v367 = vmul.f32 %v271, %v347
      %v368 = vmul.f32 %v272, %v347
      %v369 = vmul.f32 %v273, %v347
      %v370 = vmul.f32 %v274, %v347
      %v371 = vmul.f32 %v275, %v347
      %v372 = vmul.f32 %v276, %v347
      %v373 = vmul.f32 %v277, %v347
      %v374 = vmul.f32 %v278, %v347
      %v375 = vmul.f32 %v279, %v347
      %v376 = vmul.f32 %v280, %v347
      %v377 = vmul.f32 %v281, %v347
      %v378 = vmul.f32 %v282, %v347
      %v379 = vmul.f32 %v283, %v347
      %v380 = vmul.f32 %v284, %v347
      %v381 = vmul.f32 %v285, %v347
      %v382 = vmul.f32 %v286, %v347
      %v383 = vmul.f32 %v287, %v347
      %v384 = vmul.f32 %v288, %v347
      %v385 = vmul.f32 %v289, %v347
      %v386 = vmul.f32 %v290, %v347
      %v387 = vmul.f32 %v291, %v347
      %v388 = vmul.f32 %v292, %v347
      %v389 = vmul.f32 %v293, %v347
      %v390 = vmul.f32 %v294, %v347
      %v391 = vmul.f32 %v295, %v347
      %v392 = vmul.f32 %v296, %v347
      %v393 = vmul.f32 %v297, %v347
      %v394 = vmul.f32 %v298, %v347
      %v395 = vmul.f32 %v299, %v347
      %vm444 = vcmask 1046528
      %v445 = vrot.slane %v348, 1
      %v446 = vrot.slane %v349, 1
      %v447 = vsel %vm444, %v445, %v446
      %v448 = vrot.slane %v350, 1
      %v449 = vsel %vm444, %v446, %v448
      %v450 = vrot.slane %v351, 1
      %v451 = vrot.slane %v352, 1
      %v452 = vsel %vm444, %v450, %v451
      %v453 = vrot.slane %v353, 1
      %v454 = vsel %vm444, %v451, %v453
      %v455 = vrot.slane %v354, 1
      %v456 = vrot.slane %v355, 1
      %v457 = vsel %vm444, %v455, %v456
      %v458 = vrot.slane %v356, 1
      %v459 = vsel %vm444, %v456, %v458
      %v460 = vrot.slane %v357, 1
      %v461 = vrot.slane %v358, 1
      %v462 = vsel %vm444, %v460, %v461
      %v463 = vrot.slane %v359, 1
      %v464 = vsel %vm444, %v461, %v463
      %v465 = vrot.slane %v360, 1
      %v466 = vrot.slane %v361, 1
      %v467 = vsel %vm444, %v465, %v466
      %v468 = vrot.slane %v362, 1
      %v469 = vsel %vm444, %v466, %v468
      %v470 = vrot.slane %v363, 1
      %v471 = vrot.slane %v364, 1
      %v472 = vsel %vm444, %v470, %v471
      %v473 = vrot.slane %v365, 1
      %v474 = vsel %vm444, %v471, %v473
      %v475 = vrot.slane %v366, 1
      %v476 = vrot.slane %v367, 1
      %v477 = vsel %vm444, %v475, %v476
      %v478 = vrot.slane %v368, 1
      %v479 = vsel %vm444, %v476, %v478
      %v480 = vrot.slane %v369, 1
      %v481 = vrot.slane %v370, 1
      %v482 = vsel %vm444, %v480, %v481
      %v483 = vrot.slane %v371, 1
      %v484 = vsel %vm444, %v481, %v483
      %v485 = vrot.slane %v372, 1
      %v486 = vrot.slane %v373, 1
      %v487 = vsel %vm444, %v485, %v486
      %v488 = vrot.slane %v374, 1
      %v489 = vsel %vm444, %v486, %v488
      %v490 = vrot.slane %v375, 1
      %v491 = vrot.slane %v376, 1
      %v492 = vsel %vm444, %v490, %v491
      %v493 = vrot.slane %v377, 1
      %v494 = vsel %vm444, %v491, %v493
      %v495 = vrot.slane %v378, 1
      %v496 = vrot.slane %v379, 1
      %v497 = vsel %vm444, %v495, %v496
      %v498 = vrot.slane %v380, 1
      %v499 = vsel %vm444, %v496, %v498
      %v500 = vrot.slane %v381, 1
      %v501 = vrot.slane %v382, 1
      %v502 = vsel %vm444, %v500, %v501
      %v503 = vrot.slane %v383, 1
      %v504 = vsel %vm444, %v501, %v503
      %v505 = vrot.slane %v384, 1
      %v506 = vrot.slane %v385, 1
      %v507 = vsel %vm444, %v505, %v506
      %v508 = vrot.slane %v386, 1
      %v509 = vsel %vm444, %v506, %v508
      %v510 = vrot.slane %v387, 1
      %v511 = vrot.slane %v388, 1
      %v512 = vsel %vm444, %v510, %v511
      %v513 = vrot.slane %v389, 1
      %v514 = vsel %vm444, %v511, %v513
      %v515 = vrot.slane %v390, 1
      %v516 = vrot.slane %v391, 1
      %v517 = vsel %vm444, %v515, %v516
      %v518 = vrot.slane %v392, 1
      %v519 = vsel %vm444, %v516, %v518
      %v520 = vrot.slane %v393, 1
      %v521 = vrot.slane %v394, 1
      %v522 = vsel %vm444, %v520, %v521
      %v523 = vrot.slane %v395, 1
      %v524 = vsel %vm444, %v521, %v523
      %v557 = vadd.f32 %v312, %v447
      %v558 = vadd.f32 %v313, %v449
      %v559 = vadd.f32 %v314, %v452
      %v560 = vadd.f32 %v315, %v454
      %v561 = vadd.f32 %v316, %v457
      %v562 = vadd.f32 %v317, %v459
      %v563 = vadd.f32 %v318, %v462
      %v564 = vadd.f32 %v319, %v464
      %v565 = vadd.f32 %v320, %v467
      %v566 = vadd.f32 %v321, %v469
      %v567 = vadd.f32 %v322, %v472
      %v568 = vadd.f32 %v323, %v474
      %v569 = vadd.f32 %v324, %v477
      %v570 = vadd.f32 %v325, %v479
      %v571 = vadd.f32 %v326, %v482
      %v572 = vadd.f32 %v327, %v484
      %v573 = vadd.f32 %v328, %v487
      %v574 = vadd.f32 %v329, %v489
      %v575 = vadd.f32 %v330, %v492
      %v576 = vadd.f32 %v331, %v494
      %v577 = vadd.f32 %v332, %v497
      %v578 = vadd.f32 %v333, %v499
      %v579 = vadd.f32 %v334, %v502
      %v580 = vadd.f32 %v335, %v504
      %v581 = vadd.f32 %v336, %v507
      %v582 = vadd.f32 %v337, %v509
      %v583 = vadd.f32 %v338, %v512
      %v584 = vadd.f32 %v339, %v514
      %v585 = vadd.f32 %v340, %v517
      %v586 = vadd.f32 %v341, %v519
      %v587 = vadd.f32 %v342, %v522
      %v588 = vadd.f32 %v343, %v524
      %v589 = vlaneseq
      %v590 = vshrl.u32 %v589, 7
      %v591 = vsub.s32 2, %v590
      %v592 = vrot.slane %v306, %v591
      %v593 = vmul.f32 %v252, %v592
      %v594 = vmul.f32 %v253, %v592
      %v595 = vmul.f32 %v254, %v592
      %v596 = vmul.f32 %v255, %v592
      %v597 = vmul.f32 %v256, %v592
      %v598 = vmul.f32 %v257, %v592
      %v599 = vmul.f32 %v258, %v592
      %v600 = vmul.f32 %v259, %v592
      %v601 = vmul.f32 %v260, %v592
      %v602 = vmul.f32 %v261, %v592
      %v603 = vmul.f32 %v262, %v592
      %v604 = vmul.f32 %v263, %v592
      %v605 = vmul.f32 %v264, %v592
      %v606 = vmul.f32 %v265, %v592
      %v607 = vmul.f32 %v266, %v592
      %v608 = vmul.f32 %v267, %v592
      %v609 = vmul.f32 %v268, %v592
      %v610 = vmul.f32 %v269, %v592
      %v611 = vmul.f32 %v270, %v592
      %v612 = vmul.f32 %v271, %v592
      %v613 = vmul.f32 %v272, %v592
      %v614 = vmul.f32 %v273, %v592
      %v615 = vmul.f32 %v274, %v592
      %v616 = vmul.f32 %v275, %v592
      %v617 = vmul.f32 %v276, %v592
      %v618 = vmul.f32 %v277, %v592
      %v619 = vmul.f32 %v278, %v592
      %v620 = vmul.f32 %v279, %v592
      %v621 = vmul.f32 %v280, %v592
      %v622 = vmul.f32 %v281, %v592
      %v623 = vmul.f32 %v282, %v592
      %v624 = vmul.f32 %v283, %v592
      %v625 = vmul.f32 %v284, %v592
      %v626 = vmul.f32 %v285, %v592
      %v627 = vmul.f32 %v286, %v592
      %v628 = vmul.f32 %v287, %v592
      %v629 = vmul.f32 %v288, %v592
      %v630 = vmul.f32 %v289, %v592
      %v631 = vmul.f32 %v290, %v592
      %v632 = vmul.f32 %v291, %v592
      %v633 = vmul.f32 %v292, %v592
      %v634 = vmul.f32 %v293, %v592
      %v635 = vmul.f32 %v294, %v592
      %v636 = vmul.f32 %v295, %v592
      %v637 = vmul.f32 %v296, %v592
      %v638 = vmul.f32 %v297, %v592
      %v639 = vmul.f32 %v298, %v592
      %v640 = vmul.f32 %v299, %v592
      %vm689 = vcmask 1045504
      %v690 = vrot.slane %v593, 2
      %v691 = vrot.slane %v594, 2
      %v692 = vsel %vm689, %v690, %v691
      %v693 = vrot.slane %v595, 2
      %v694 = vsel %vm689, %v691, %v693
      %v695 = vrot.slane %v596, 2
      %v696 = vrot.slane %v597, 2
      %v697 = vsel %vm689, %v695, %v696
      %v698 = vrot.slane %v598, 2
      %v699 = vsel %vm689, %v696, %v698
      %v700 = vrot.slane %v599, 2
      %v701 = vrot.slane %v600, 2
      %v702 = vsel %vm689, %v700, %v701
      %v703 = vrot.slane %v601, 2
      %v704 = vsel %vm689, %v701, %v703
      %v705 = vrot.slane %v602, 2
      %v706 = vrot.slane %v603, 2
      %v707 = vsel %vm689, %v705, %v706
      %v708 = vrot.slane %v604, 2
      %v709 = vsel %vm689, %v706, %v708
      %v710 = vrot.slane %v605, 2
      %v711 = vrot.slane %v606, 2
      %v712 = vsel %vm689, %v710, %v711
      %v713 = vrot.slane %v607, 2
      %v714 = vsel %vm689, %v711, %v713
      %v715 = vrot.slane %v608, 2
      %v716 = vrot.slane %v609, 2
      %v717 = vsel %vm689, %v715, %v716
      %v718 = vrot.slane %v610, 2
      %v719 = vsel %vm689, %v716, %v718
      %v720 = vrot.slane %v611, 2
      %v721 = vrot.slane %v612, 2
      %v722 = vsel %vm689, %v720, %v721
      %v723 = vrot.slane %v613, 2
      %v724 = vsel %vm689, %v721, %v723
      %v725 = vrot.slane %v614, 2
      %v726 = vrot.slane %v615, 2
      %v727 = vsel %vm689, %v725, %v726
      %v728 = vrot.slane %v616, 2
      %v729 = vsel %vm689, %v726, %v728
      %v730 = vrot.slane %v617, 2
      %v731 = vrot.slane %v618, 2
      %v732 = vsel %vm689, %v730, %v731
      %v733 = vrot.slane %v619, 2
      %v734 = vsel %vm689, %v731, %v733
      %v735 = vrot.slane %v620, 2
      %v736 = vrot.slane %v621, 2
      %v737 = vsel %vm689, %v735, %v736
      %v738 = vrot.slane %v622, 2
      %v739 = vsel %vm689, %v736, %v738
      %v740 = vrot.slane %v623, 2
      %v741 = vrot.slane %v624, 2
      %v742 = vsel %vm689, %v740, %v741
      %v743 = vrot.slane %v625, 2
      %v744 = vsel %vm689, %v741, %v743
      %v745 = vrot.slane %v626, 2
      %v746 = vrot.slane %v627, 2
      %v747 = vsel %vm689, %v745, %v746
      %v748 = vrot.slane %v628, 2
      %v749 = vsel %vm689, %v746, %v748
      %v750 = vrot.slane %v629, 2
      %v751 = vrot.slane %v630, 2
      %v752 = vsel %vm689, %v750, %v751
      %v753 = vrot.slane %v631, 2
      %v754 = vsel %vm689, %v751, %v753
      %v755 = vrot.slane %v632, 2
      %v756 = vrot.slane %v633, 2
      %v757 = vsel %vm689, %v755, %v756
      %v758 = vrot.slane %v634, 2
      %v759 = vsel %vm689, %v756, %v758
      %v760 = vrot.slane %v635, 2
      %v761 = vrot.slane %v636, 2
      %v762 = vsel %vm689, %v760, %v761
      %v763 = vrot.slane %v637, 2
      %v764 = vsel %vm689, %v761, %v763
      %v765 = vrot.slane %v638, 2
      %v766 = vrot.slane %v639, 2
      %v767 = vsel %vm689, %v765, %v766
      %v768 = vrot.slane %v640, 2
      %v769 = vsel %vm689, %v766, %v768
      %v802 = vadd.f32 %v557, %v692
      %v803 = vadd.f32 %v558, %v694
      %v804 = vadd.f32 %v559, %v697
      %v805 = vadd.f32 %v560, %v699
      %v806 = vadd.f32 %v561, %v702
      %v807 = vadd.f32 %v562, %v704
      %v808 = vadd.f32 %v563, %v707
      %v809 = vadd.f32 %v564, %v709
      %v810 = vadd.f32 %v565, %v712
      %v811 = vadd.f32 %v566, %v714
      %v812 = vadd.f32 %v567, %v717
      %v813 = vadd.f32 %v568, %v719
      %v814 = vadd.f32 %v569, %v722
      %v815 = vadd.f32 %v570, %v724
      %v816 = vadd.f32 %v571, %v727
      %v817 = vadd.f32 %v572, %v729
      %v818 = vadd.f32 %v573, %v732
      %v819 = vadd.f32 %v574, %v734
      %v820 = vadd.f32 %v575, %v737
      %v821 = vadd.f32 %v576, %v739
      %v822 = vadd.f32 %v577, %v742
      %v823 = vadd.f32 %v578, %v744
      %v824 = vadd.f32 %v579, %v747
      %v825 = vadd.f32 %v580, %v749
      %v826 = vadd.f32 %v581, %v752
      %v827 = vadd.f32 %v582, %v754
      %v828 = vadd.f32 %v583, %v757
      %v829 = vadd.f32 %v584, %v759
      %v830 = vadd.f32 %v585, %v762
      %v831 = vadd.f32 %v586, %v764
      %v832 = vadd.f32 %v587, %v767
      %v833 = vadd.f32 %v588, %v769
      %v834 = vlaneseq
      %v835 = vshrl.u32 %v834, 7
      %v836 = vsub.s32 3, %v835
      %v837 = vrot.slane %v306, %v836
      %v838 = vmul.f32 %v255, %v837
      %v839 = vmul.f32 %v256, %v837
      %v840 = vmul.f32 %v258, %v837
      %v841 = vmul.f32 %v259, %v837
      %v842 = vmul.f32 %v261, %v837
      %v843 = vmul.f32 %v262, %v837
      %v844 = vmul.f32 %v264, %v837
      %v845 = vmul.f32 %v265, %v837
      %v846 = vmul.f32 %v267, %v837
      %v847 = vmul.f32 %v268, %v837
      %v848 = vmul.f32 %v270, %v837
      %v849 = vmul.f32 %v271, %v837
      %v850 = vmul.f32 %v273, %v837
      %v851 = vmul.f32 %v274, %v837
      %v852 = vmul.f32 %v276, %v837
      %v853 = vmul.f32 %v277, %v837
      %v854 = vmul.f32 %v279, %v837
      %v855 = vmul.f32 %v280, %v837
      %v856 = vmul.f32 %v282, %v837
      %v857 = vmul.f32 %v283, %v837
      %v858 = vmul.f32 %v285, %v837
      %v859 = vmul.f32 %v286, %v837
      %v860 = vmul.f32 %v288, %v837
      %v861 = vmul.f32 %v289, %v837
      %v862 = vmul.f32 %v291, %v837
      %v863 = vmul.f32 %v292, %v837
      %v864 = vmul.f32 %v294, %v837
      %v865 = vmul.f32 %v295, %v837
      %v866 = vmul.f32 %v297, %v837
      %v867 = vmul.f32 %v298, %v837
      %v868 = vmul.f32 %v300, %v837
      %v869 = vmul.f32 %v301, %v837
      %v870 = vadd.f32 %v802, %v838
      %v871 = vadd.f32 %v803, %v839
      %v872 = vadd.f32 %v804, %v840
      %v873 = vadd.f32 %v805, %v841
      %v874 = vadd.f32 %v806, %v842
      %v875 = vadd.f32 %v807, %v843
      %v876 = vadd.f32 %v808, %v844
      %v877 = vadd.f32 %v809, %v845
      %v878 = vadd.f32 %v810, %v846
      %v879 = vadd.f32 %v811, %v847
      %v880 = vadd.f32 %v812, %v848
      %v881 = vadd.f32 %v813, %v849
      %v882 = vadd.f32 %v814, %v850
      %v883 = vadd.f32 %v815, %v851
      %v884 = vadd.f32 %v816, %v852
      %v885 = vadd.f32 %v817, %v853
      %v886 = vadd.f32 %v818, %v854
      %v887 = vadd.f32 %v819, %v855
      %v888 = vadd.f32 %v820, %v856
      %v889 = vadd.f32 %v821, %v857
      %v890 = vadd.f32 %v822, %v858
      %v891 = vadd.f32 %v823, %v859
      %v892 = vadd.f32 %v824, %v860
      %v893 = vadd.f32 %v825, %v861
      %v894 = vadd.f32 %v826, %v862
      %v895 = vadd.f32 %v827, %v863
      %v896 = vadd.f32 %v828, %v864
      %v897 = vadd.f32 %v829, %v865
      %v898 = vadd.f32 %v830, %v866
      %v899 = vadd.f32 %v831, %v867
      %v900 = vadd.f32 %v832, %v868
      %v901 = vadd.f32 %v833, %v869
      %v902 = vlaneseq
      %v903 = vshrl.u32 %v902, 7
      %v904 = vsub.s32 4, %v903
      %v905 = vrot.slane %v306, %v904
      %v906 = vmul.f32 %v255, %v905
      %v907 = vmul.f32 %v256, %v905
      %v908 = vmul.f32 %v257, %v905
      %v909 = vmul.f32 %v258, %v905
      %v910 = vmul.f32 %v259, %v905
      %v911 = vmul.f32 %v260, %v905
      %v912 = vmul.f32 %v261, %v905
      %v913 = vmul.f32 %v262, %v905
      %v914 = vmul.f32 %v263, %v905
      %v915 = vmul.f32 %v264, %v905
      %v916 = vmul.f32 %v265, %v905
      %v917 = vmul.f32 %v266, %v905
      %v918 = vmul.f32 %v267, %v905
      %v919 = vmul.f32 %v268, %v905
      %v920 = vmul.f32 %v269, %v905
      %v921 = vmul.f32 %v270, %v905
      %v922 = vmul.f32 %v271, %v905
      %v923 = vmul.f32 %v272, %v905
      %v924 = vmul.f32 %v273, %v905
      %v925 = vmul.f32 %v274, %v905
      %v926 = vmul.f32 %v275, %v905
      %v927 = vmul.f32 %v276, %v905
      %v928 = vmul.f32 %v277, %v905
      %v929 = vmul.f32 %v278, %v905
      %v930 = vmul.f32 %v279, %v905
      %v931 = vmul.f32 %v280, %v905
      %v932 = vmul.f32 %v281, %v905
      %v933 = vmul.f32 %v282, %v905
      %v934 = vmul.f32 %v283, %v905
      %v935 = vmul.f32 %v284, %v905
      %v936 = vmul.f32 %v285, %v905
      %v937 = vmul.f32 %v286, %v905
      %v938 = vmul.f32 %v287, %v905
      %v939 = vmul.f32 %v288, %v905
      %v940 = vmul.f32 %v289, %v905
      %v941 = vmul.f32 %v290, %v905
      %v942 = vmul.f32 %v291, %v905
      %v943 = vmul.f32 %v292, %v905
      %v944 = vmul.f32 %v293, %v905
      %v945 = vmul.f32 %v294, %v905
      %v946 = vmul.f32 %v295, %v905
      %v947 = vmul.f32 %v296, %v905
      %v948 = vmul.f32 %v297, %v905
      %v949 = vmul.f32 %v298, %v905
      %v950 = vmul.f32 %v299, %v905
      %v951 = vmul.f32 %v300, %v905
      %v952 = vmul.f32 %v301, %v905
      %v953 = vmul.f32 %v302, %v905
      %v1002 = vrot.slane %v906, 1
      %v1003 = vrot.slane %v907, 1
      %v1004 = vsel %vm444, %v1002, %v1003
      %v1005 = vrot.slane %v908, 1
      %v1006 = vsel %vm444, %v1003, %v1005
      %v1007 = vrot.slane %v909, 1
      %v1008 = vrot.slane %v910, 1
      %v1009 = vsel %vm444, %v1007, %v1008
      %v1010 = vrot.slane %v911, 1
      %v1011 = vsel %vm444, %v1008, %v1010
      %v1012 = vrot.slane %v912, 1
      %v1013 = vrot.slane %v913, 1
      %v1014 = vsel %vm444, %v1012, %v1013
      %v1015 = vrot.slane %v914, 1
      %v1016 = vsel %vm444, %v1013, %v1015
      %v1017 = vrot.slane %v915, 1
      %v1018 = vrot.slane %v916, 1
      %v1019 = vsel %vm444, %v1017, %v1018
      %v1020 = vrot.slane %v917, 1
      %v1021 = vsel %vm444, %v1018, %v1020
      %v1022 = vrot.slane %v918, 1
      %v1023 = vrot.slane %v919, 1
      %v1024 = vsel %vm444, %v1022, %v1023
      %v1025 = vrot.slane %v920, 1
      %v1026 = vsel %vm444, %v1023, %v1025
      %v1027 = vrot.slane %v921, 1
      %v1028 = vrot.slane %v922, 1
      %v1029 = vsel %vm444, %v1027, %v1028
      %v1030 = vrot.slane %v923, 1
      %v1031 = vsel %vm444, %v1028, %v1030
      %v1032 = vrot.slane %v924, 1
      %v1033 = vrot.slane %v925, 1
      %v1034 = vsel %vm444, %v1032, %v1033
      %v1035 = vrot.slane %v926, 1
      %v1036 = vsel %vm444, %v1033, %v1035
      %v1037 = vrot.slane %v927, 1
      %v1038 = vrot.slane %v928, 1
      %v1039 = vsel %vm444, %v1037, %v1038
      %v1040 = vrot.slane %v929, 1
      %v1041 = vsel %vm444, %v1038, %v1040
      %v1042 = vrot.slane %v930, 1
      %v1043 = vrot.slane %v931, 1
      %v1044 = vsel %vm444, %v1042, %v1043
      %v1045 = vrot.slane %v932, 1
      %v1046 = vsel %vm444, %v1043, %v1045
      %v1047 = vrot.slane %v933, 1
      %v1048 = vrot.slane %v934, 1
      %v1049 = vsel %vm444, %v1047, %v1048
      %v1050 = vrot.slane %v935, 1
      %v1051 = vsel %vm444, %v1048, %v1050
      %v1052 = vrot.slane %v936, 1
      %v1053 = vrot.slane %v937, 1
      %v1054 = vsel %vm444, %v1052, %v1053
      %v1055 = vrot.slane %v938, 1
      %v1056 = vsel %vm444, %v1053, %v1055
      %v1057 = vrot.slane %v939, 1
      %v1058 = vrot.slane %v940, 1
      %v1059 = vsel %vm444, %v1057, %v1058
      %v1060 = vrot.slane %v941, 1
      %v1061 = vsel %vm444, %v1058, %v1060
      %v1062 = vrot.slane %v942, 1
      %v1063 = vrot.slane %v943, 1
      %v1064 = vsel %vm444, %v1062, %v1063
      %v1065 = vrot.slane %v944, 1
      %v1066 = vsel %vm444, %v1063, %v1065
      %v1067 = vrot.slane %v945, 1
      %v1068 = vrot.slane %v946, 1
      %v1069 = vsel %vm444, %v1067, %v1068
      %v1070 = vrot.slane %v947, 1
      %v1071 = vsel %vm444, %v1068, %v1070
      %v1072 = vrot.slane %v948, 1
      %v1073 = vrot.slane %v949, 1
      %v1074 = vsel %vm444, %v1072, %v1073
      %v1075 = vrot.slane %v950, 1
      %v1076 = vsel %vm444, %v1073, %v1075
      %v1077 = vrot.slane %v951, 1
      %v1078 = vrot.slane %v952, 1
      %v1079 = vsel %vm444, %v1077, %v1078
      %v1080 = vrot.slane %v953, 1
      %v1081 = vsel %vm444, %v1078, %v1080
      %v1114 = vadd.f32 %v870, %v1004
      %v1115 = vadd.f32 %v871, %v1006
      %v1116 = vadd.f32 %v872, %v1009
      %v1117 = vadd.f32 %v873, %v1011
      %v1118 = vadd.f32 %v874, %v1014
      %v1119 = vadd.f32 %v875, %v1016
      %v1120 = vadd.f32 %v876, %v1019
      %v1121 = vadd.f32 %v877, %v1021
      %v1122 = vadd.f32 %v878, %v1024
      %v1123 = vadd.f32 %v879, %v1026
      %v1124 = vadd.f32 %v880, %v1029
      %v1125 = vadd.f32 %v881, %v1031
      %v1126 = vadd.f32 %v882, %v1034
      %v1127 = vadd.f32 %v883, %v1036
      %v1128 = vadd.f32 %v884, %v1039
      %v1129 = vadd.f32 %v885, %v1041
      %v1130 = vadd.f32 %v886, %v1044
      %v1131 = vadd.f32 %v887, %v1046
      %v1132 = vadd.f32 %v888, %v1049
      %v1133 = vadd.f32 %v889, %v1051
      %v1134 = vadd.f32 %v890, %v1054
      %v1135 = vadd.f32 %v891, %v1056
      %v1136 = vadd.f32 %v892, %v1059
      %v1137 = vadd.f32 %v893, %v1061
      %v1138 = vadd.f32 %v894, %v1064
      %v1139 = vadd.f32 %v895, %v1066
      %v1140 = vadd.f32 %v896, %v1069
      %v1141 = vadd.f32 %v897, %v1071
      %v1142 = vadd.f32 %v898, %v1074
      %v1143 = vadd.f32 %v899, %v1076
      %v1144 = vadd.f32 %v900, %v1079
      %v1145 = vadd.f32 %v901, %v1081
      %v1146 = vlaneseq
      %v1147 = vshrl.u32 %v1146, 7
      %v1148 = vsub.s32 5, %v1147
      %v1149 = vrot.slane %v306, %v1148
      %v1150 = vmul.f32 %v255, %v1149
      %v1151 = vmul.f32 %v256, %v1149
      %v1152 = vmul.f32 %v257, %v1149
      %v1153 = vmul.f32 %v258, %v1149
      %v1154 = vmul.f32 %v259, %v1149
      %v1155 = vmul.f32 %v260, %v1149
      %v1156 = vmul.f32 %v261, %v1149
      %v1157 = vmul.f32 %v262, %v1149
      %v1158 = vmul.f32 %v263, %v1149
      %v1159 = vmul.f32 %v264, %v1149
      %v1160 = vmul.f32 %v265, %v1149
      %v1161 = vmul.f32 %v266, %v1149
      %v1162 = vmul.f32 %v267, %v1149
      %v1163 = vmul.f32 %v268, %v1149
      %v1164 = vmul.f32 %v269, %v1149
      %v1165 = vmul.f32 %v270, %v1149
      %v1166 = vmul.f32 %v271, %v1149
      %v1167 = vmul.f32 %v272, %v1149
      %v1168 = vmul.f32 %v273, %v1149
      %v1169 = vmul.f32 %v274, %v1149
      %v1170 = vmul.f32 %v275, %v1149
      %v1171 = vmul.f32 %v276, %v1149
      %v1172 = vmul.f32 %v277, %v1149
      %v1173 = vmul.f32 %v278, %v1149
      %v1174 = vmul.f32 %v279, %v1149
      %v1175 = vmul.f32 %v280, %v1149
      %v1176 = vmul.f32 %v281, %v1149
      %v1177 = vmul.f32 %v282, %v1149
      %v1178 = vmul.f32 %v283, %v1149
      %v1179 = vmul.f32 %v284, %v1149
      %v1180 = vmul.f32 %v285, %v1149
      %v1181 = vmul.f32 %v286, %v1149
      %v1182 = vmul.f32 %v287, %v1149
      %v1183 = vmul.f32 %v288, %v1149
      %v1184 = vmul.f32 %v289, %v1149
      %v1185 = vmul.f32 %v290, %v1149
      %v1186 = vmul.f32 %v291, %v1149
      %v1187 = vmul.f32 %v292, %v1149
      %v1188 = vmul.f32 %v293, %v1149
      %v1189 = vmul.f32 %v294, %v1149
      %v1190 = vmul.f32 %v295, %v1149
      %v1191 = vmul.f32 %v296, %v1149
      %v1192 = vmul.f32 %v297, %v1149
      %v1193 = vmul.f32 %v298, %v1149
      %v1194 = vmul.f32 %v299, %v1149
      %v1195 = vmul.f32 %v300, %v1149
      %v1196 = vmul.f32 %v301, %v1149
      %v1197 = vmul.f32 %v302, %v1149
      %v1246 = vrot.slane %v1150, 2
      %v1247 = vrot.slane %v1151, 2
      %v1248 = vsel %vm689, %v1246, %v1247
      %v1249 = vrot.slane %v1152, 2
      %v1250 = vsel %vm689, %v1247, %v1249
      %v1251 = vrot.slane %v1153, 2
      %v1252 = vrot.slane %v1154, 2
      %v1253 = vsel %vm689, %v1251, %v1252
      %v1254 = vrot.slane %v1155, 2
      %v1255 = vsel %vm689, %v1252, %v1254
      %v1256 = vrot.slane %v1156, 2
      %v1257 = vrot.slane %v1157, 2
      %v1258 = vsel %vm689, %v1256, %v1257
      %v1259 = vrot.slane %v1158, 2
      %v1260 = vsel %vm689, %v1257, %v1259
      %v1261 = vrot.slane %v1159, 2
      %v1262 = vrot.slane %v1160, 2
      %v1263 = vsel %vm689, %v1261, %v1262
      %v1264 = vrot.slane %v1161, 2
      %v1265 = vsel %vm689, %v1262, %v1264
      %v1266 = vrot.slane %v1162, 2
      %v1267 = vrot.slane %v1163, 2
      %v1268 = vsel %vm689, %v1266, %v1267
      %v1269 = vrot.slane %v1164, 2
      %v1270 = vsel %vm689, %v1267, %v1269
      %v1271 = vrot.slane %v1165, 2
      %v1272 = vrot.slane %v1166, 2
      %v1273 = vsel %vm689, %v1271, %v1272
      %v1274 = vrot.slane %v1167, 2
      %v1275 = vsel %vm689, %v1272, %v1274
      %v1276 = vrot.slane %v1168, 2
      %v1277 = vrot.slane %v1169, 2
      %v1278 = vsel %vm689, %v1276, %v1277
      %v1279 = vrot.slane %v1170, 2
      %v1280 = vsel %vm689, %v1277, %v1279
      %v1281 = vrot.slane %v1171, 2
      %v1282 = vrot.slane %v1172, 2
      %v1283 = vsel %vm689, %v1281, %v1282
      %v1284 = vrot.slane %v1173, 2
      %v1285 = vsel %vm689, %v1282, %v1284
      %v1286 = vrot.slane %v1174, 2
      %v1287 = vrot.slane %v1175, 2
      %v1288 = vsel %vm689, %v1286, %v1287
      %v1289 = vrot.slane %v1176, 2
      %v1290 = vsel %vm689, %v1287, %v1289
      %v1291 = vrot.slane %v1177, 2
      %v1292 = vrot.slane %v1178, 2
      %v1293 = vsel %vm689, %v1291, %v1292
      %v1294 = vrot.slane %v1179, 2
      %v1295 = vsel %vm689, %v1292, %v1294
      %v1296 = vrot.slane %v1180, 2
      %v1297 = vrot.slane %v1181, 2
      %v1298 = vsel %vm689, %v1296, %v1297
      %v1299 = vrot.slane %v1182, 2
      %v1300 = vsel %vm689, %v1297, %v1299
      %v1301 = vrot.slane %v1183, 2
      %v1302 = vrot.slane %v1184, 2
      %v1303 = vsel %vm689, %v1301, %v1302
      %v1304 = vrot.slane %v1185, 2
      %v1305 = vsel %vm689, %v1302, %v1304
      %v1306 = vrot.slane %v1186, 2
      %v1307 = vrot.slane %v1187, 2
      %v1308 = vsel %vm689, %v1306, %v1307
      %v1309 = vrot.slane %v1188, 2
      %v1310 = vsel %vm689, %v1307, %v1309
      %v1311 = vrot.slane %v1189, 2
      %v1312 = vrot.slane %v1190, 2
      %v1313 = vsel %vm689, %v1311, %v1312
      %v1314 = vrot.slane %v1191, 2
      %v1315 = vsel %vm689, %v1312, %v1314
      %v1316 = vrot.slane %v1192, 2
      %v1317 = vrot.slane %v1193, 2
      %v1318 = vsel %vm689, %v1316, %v1317
      %v1319 = vrot.slane %v1194, 2
      %v1320 = vsel %vm689, %v1317, %v1319
      %v1321 = vrot.slane %v1195, 2
      %v1322 = vrot.slane %v1196, 2
      %v1323 = vsel %vm689, %v1321, %v1322
      %v1324 = vrot.slane %v1197, 2
      %v1325 = vsel %vm689, %v1322, %v1324
      %v1358 = vadd.f32 %v1114, %v1248
      %v1359 = vadd.f32 %v1115, %v1250
      %v1360 = vadd.f32 %v1116, %v1253
      %v1361 = vadd.f32 %v1117, %v1255
      %v1362 = vadd.f32 %v1118, %v1258
      %v1363 = vadd.f32 %v1119, %v1260
      %v1364 = vadd.f32 %v1120, %v1263
      %v1365 = vadd.f32 %v1121, %v1265
      %v1366 = vadd.f32 %v1122, %v1268
      %v1367 = vadd.f32 %v1123, %v1270
      %v1368 = vadd.f32 %v1124, %v1273
      %v1369 = vadd.f32 %v1125, %v1275
      %v1370 = vadd.f32 %v1126, %v1278
      %v1371 = vadd.f32 %v1127, %v1280
      %v1372 = vadd.f32 %v1128, %v1283
      %v1373 = vadd.f32 %v1129, %v1285
      %v1374 = vadd.f32 %v1130, %v1288
      %v1375 = vadd.f32 %v1131, %v1290
      %v1376 = vadd.f32 %v1132, %v1293
      %v1377 = vadd.f32 %v1133, %v1295
      %v1378 = vadd.f32 %v1134, %v1298
      %v1379 = vadd.f32 %v1135, %v1300
      %v1380 = vadd.f32 %v1136, %v1303
      %v1381 = vadd.f32 %v1137, %v1305
      %v1382 = vadd.f32 %v1138, %v1308
      %v1383 = vadd.f32 %v1139, %v1310
      %v1384 = vadd.f32 %v1140, %v1313
      %v1385 = vadd.f32 %v1141, %v1315
      %v1386 = vadd.f32 %v1142, %v1318
      %v1387 = vadd.f32 %v1143, %v1320
      %v1388 = vadd.f32 %v1144, %v1323
      %v1389 = vadd.f32 %v1145, %v1325
      %v1390 = vlaneseq
      %v1391 = vshrl.u32 %v1390, 7
      %v1392 = vsub.s32 6, %v1391
      %v1393 = vrot.slane %v306, %v1392
      %v1394 = vmul.f32 %v258, %v1393
      %v1395 = vmul.f32 %v259, %v1393
      %v1396 = vmul.f32 %v261, %v1393
      %v1397 = vmul.f32 %v262, %v1393
      %v1398 = vmul.f32 %v264, %v1393
      %v1399 = vmul.f32 %v265, %v1393
      %v1400 = vmul.f32 %v267, %v1393
      %v1401 = vmul.f32 %v268, %v1393
      %v1402 = vmul.f32 %v270, %v1393
      %v1403 = vmul.f32 %v271, %v1393
      %v1404 = vmul.f32 %v273, %v1393
      %v1405 = vmul.f32 %v274, %v1393
      %v1406 = vmul.f32 %v276, %v1393
      %v1407 = vmul.f32 %v277, %v1393
      %v1408 = vmul.f32 %v279, %v1393
      %v1409 = vmul.f32 %v280, %v1393
      %v1410 = vmul.f32 %v282, %v1393
      %v1411 = vmul.f32 %v283, %v1393
      %v1412 = vmul.f32 %v285, %v1393
      %v1413 = vmul.f32 %v286, %v1393
      %v1414 = vmul.f32 %v288, %v1393
      %v1415 = vmul.f32 %v289, %v1393
      %v1416 = vmul.f32 %v291, %v1393
      %v1417 = vmul.f32 %v292, %v1393
      %v1418 = vmul.f32 %v294, %v1393
      %v1419 = vmul.f32 %v295, %v1393
      %v1420 = vmul.f32 %v297, %v1393
      %v1421 = vmul.f32 %v298, %v1393
      %v1422 = vmul.f32 %v300, %v1393
      %v1423 = vmul.f32 %v301, %v1393
      %v1424 = vmul.f32 %v303, %v1393
      %v1425 = vmul.f32 %v304, %v1393
      %v1426 = vadd.f32 %v1358, %v1394
      %v1427 = vadd.f32 %v1359, %v1395
      %v1428 = vadd.f32 %v1360, %v1396
      %v1429 = vadd.f32 %v1361, %v1397
      %v1430 = vadd.f32 %v1362, %v1398
      %v1431 = vadd.f32 %v1363, %v1399
      %v1432 = vadd.f32 %v1364, %v1400
      %v1433 = vadd.f32 %v1365, %v1401
      %v1434 = vadd.f32 %v1366, %v1402
      %v1435 = vadd.f32 %v1367, %v1403
      %v1436 = vadd.f32 %v1368, %v1404
      %v1437 = vadd.f32 %v1369, %v1405
      %v1438 = vadd.f32 %v1370, %v1406
      %v1439 = vadd.f32 %v1371, %v1407
      %v1440 = vadd.f32 %v1372, %v1408
      %v1441 = vadd.f32 %v1373, %v1409
      %v1442 = vadd.f32 %v1374, %v1410
      %v1443 = vadd.f32 %v1375, %v1411
      %v1444 = vadd.f32 %v1376, %v1412
      %v1445 = vadd.f32 %v1377, %v1413
      %v1446 = vadd.f32 %v1378, %v1414
      %v1447 = vadd.f32 %v1379, %v1415
      %v1448 = vadd.f32 %v1380, %v1416
      %v1449 = vadd.f32 %v1381, %v1417
      %v1450 = vadd.f32 %v1382, %v1418
      %v1451 = vadd.f32 %v1383, %v1419
      %v1452 = vadd.f32 %v1384, %v1420
      %v1453 = vadd.f32 %v1385, %v1421
      %v1454 = vadd.f32 %v1386, %v1422
      %v1455 = vadd.f32 %v1387, %v1423
      %v1456 = vadd.f32 %v1388, %v1424
      %v1457 = vadd.f32 %v1389, %v1425
      %v1458 = vlaneseq
      %v1459 = vshrl.u32 %v1458, 7
      %v1460 = vsub.s32 7, %v1459
      %v1461 = vrot.slane %v306, %v1460
      %v1462 = vmul.f32 %v258, %v1461
      %v1463 = vmul.f32 %v259, %v1461
      %v1464 = vmul.f32 %v260, %v1461
      %v1465 = vmul.f32 %v261, %v1461
      %v1466 = vmul.f32 %v262, %v1461
      %v1467 = vmul.f32 %v263, %v1461
      %v1468 = vmul.f32 %v264, %v1461
      %v1469 = vmul.f32 %v265, %v1461
      %v1470 = vmul.f32 %v266, %v1461
      %v1471 = vmul.f32 %v267, %v1461
      %v1472 = vmul.f32 %v268, %v1461
      %v1473 = vmul.f32 %v269, %v1461
      %v1474 = vmul.f32 %v270, %v1461
      %v1475 = vmul.f32 %v271, %v1461
      %v1476 = vmul.f32 %v272, %v1461
      %v1477 = vmul.f32 %v273, %v1461
      %v1478 = vmul.f32 %v274, %v1461
      %v1479 = vmul.f32 %v275, %v1461
      %v1480 = vmul.f32 %v276, %v1461
      %v1481 = vmul.f32 %v277, %v1461
      %v1482 = vmul.f32 %v278, %v1461
      %v1483 = vmul.f32 %v279, %v1461
      %v1484 = vmul.f32 %v280, %v1461
      %v1485 = vmul.f32 %v281, %v1461
      %v1486 = vmul.f32 %v282, %v1461
      %v1487 = vmul.f32 %v283, %v1461
      %v1488 = vmul.f32 %v284, %v1461
      %v1489 = vmul.f32 %v285, %v1461
      %v1490 = vmul.f32 %v286, %v1461
      %v1491 = vmul.f32 %v287, %v1461
      %v1492 = vmul.f32 %v288, %v1461
      %v1493 = vmul.f32 %v289, %v1461
      %v1494 = vmul.f32 %v290, %v1461
      %v1495 = vmul.f32 %v291, %v1461
      %v1496 = vmul.f32 %v292, %v1461
      %v1497 = vmul.f32 %v293, %v1461
      %v1498 = vmul.f32 %v294, %v1461
      %v1499 = vmul.f32 %v295, %v1461
      %v1500 = vmul.f32 %v296, %v1461
      %v1501 = vmul.f32 %v297, %v1461
      %v1502 = vmul.f32 %v298, %v1461
      %v1503 = vmul.f32 %v299, %v1461
      %v1504 = vmul.f32 %v300, %v1461
      %v1505 = vmul.f32 %v301, %v1461
      %v1506 = vmul.f32 %v302, %v1461
      %v1507 = vmul.f32 %v303, %v1461
      %v1508 = vmul.f32 %v304, %v1461
      %v1509 = vmul.f32 %v305, %v1461
      %v1558 = vrot.slane %v1462, 1
      %v1559 = vrot.slane %v1463, 1
      %v1560 = vsel %vm444, %v1558, %v1559
      %v1561 = vrot.slane %v1464, 1
      %v1562 = vsel %vm444, %v1559, %v1561
      %v1563 = vrot.slane %v1465, 1
      %v1564 = vrot.slane %v1466, 1
      %v1565 = vsel %vm444, %v1563, %v1564
      %v1566 = vrot.slane %v1467, 1
      %v1567 = vsel %vm444, %v1564, %v1566
      %v1568 = vrot.slane %v1468, 1
      %v1569 = vrot.slane %v1469, 1
      %v1570 = vsel %vm444, %v1568, %v1569
      %v1571 = vrot.slane %v1470, 1
      %v1572 = vsel %vm444, %v1569, %v1571
      %v1573 = vrot.slane %v1471, 1
      %v1574 = vrot.slane %v1472, 1
      %v1575 = vsel %vm444, %v1573, %v1574
      %v1576 = vrot.slane %v1473, 1
      %v1577 = vsel %vm444, %v1574, %v1576
      %v1578 = vrot.slane %v1474, 1
      %v1579 = vrot.slane %v1475, 1
      %v1580 = vsel %vm444, %v1578, %v1579
      %v1581 = vrot.slane %v1476, 1
      %v1582 = vsel %vm444, %v1579, %v1581
      %v1583 = vrot.slane %v1477, 1
      %v1584 = vrot.slane %v1478, 1
      %v1585 = vsel %vm444, %v1583, %v1584
      %v1586 = vrot.slane %v1479, 1
      %v1587 = vsel %vm444, %v1584, %v1586
      %v1588 = vrot.slane %v1480, 1
      %v1589 = vrot.slane %v1481, 1
      %v1590 = vsel %vm444, %v1588, %v1589
      %v1591 = vrot.slane %v1482, 1
      %v1592 = vsel %vm444, %v1589, %v1591
      %v1593 = vrot.slane %v1483, 1
      %v1594 = vrot.slane %v1484, 1
      %v1595 = vsel %vm444, %v1593, %v1594
      %v1596 = vrot.slane %v1485, 1
      %v1597 = vsel %vm444, %v1594, %v1596
      %v1598 = vrot.slane %v1486, 1
      %v1599 = vrot.slane %v1487, 1
      %v1600 = vsel %vm444, %v1598, %v1599
      %v1601 = vrot.slane %v1488, 1
      %v1602 = vsel %vm444, %v1599, %v1601
      %v1603 = vrot.slane %v1489, 1
      %v1604 = vrot.slane %v1490, 1
      %v1605 = vsel %vm444, %v1603, %v1604
      %v1606 = vrot.slane %v1491, 1
      %v1607 = vsel %vm444, %v1604, %v1606
      %v1608 = vrot.slane %v1492, 1
      %v1609 = vrot.slane %v1493, 1
      %v1610 = vsel %vm444, %v1608, %v1609
      %v1611 = vrot.slane %v1494, 1
      %v1612 = vsel %vm444, %v1609, %v1611
      %v1613 = vrot.slane %v1495, 1
      %v1614 = vrot.slane %v1496, 1
      %v1615 = vsel %vm444, %v1613, %v1614
      %v1616 = vrot.slane %v1497, 1
      %v1617 = vsel %vm444, %v1614, %v1616
      %v1618 = vrot.slane %v1498, 1
      %v1619 = vrot.slane %v1499, 1
      %v1620 = vsel %vm444, %v1618, %v1619
      %v1621 = vrot.slane %v1500, 1
      %v1622 = vsel %vm444, %v1619, %v1621
      %v1623 = vrot.slane %v1501, 1
      %v1624 = vrot.slane %v1502, 1
      %v1625 = vsel %vm444, %v1623, %v1624
      %v1626 = vrot.slane %v1503, 1
      %v1627 = vsel %vm444, %v1624, %v1626
      %v1628 = vrot.slane %v1504, 1
      %v1629 = vrot.slane %v1505, 1
      %v1630 = vsel %vm444, %v1628, %v1629
      %v1631 = vrot.slane %v1506, 1
      %v1632 = vsel %vm444, %v1629, %v1631
      %v1633 = vrot.slane %v1507, 1
      %v1634 = vrot.slane %v1508, 1
      %v1635 = vsel %vm444, %v1633, %v1634
      %v1636 = vrot.slane %v1509, 1
      %v1637 = vsel %vm444, %v1634, %v1636
      %v1670 = vadd.f32 %v1426, %v1560
      %v1671 = vadd.f32 %v1427, %v1562
      %v1672 = vadd.f32 %v1428, %v1565
      %v1673 = vadd.f32 %v1429, %v1567
      %v1674 = vadd.f32 %v1430, %v1570
      %v1675 = vadd.f32 %v1431, %v1572
      %v1676 = vadd.f32 %v1432, %v1575
      %v1677 = vadd.f32 %v1433, %v1577
      %v1678 = vadd.f32 %v1434, %v1580
      %v1679 = vadd.f32 %v1435, %v1582
      %v1680 = vadd.f32 %v1436, %v1585
      %v1681 = vadd.f32 %v1437, %v1587
      %v1682 = vadd.f32 %v1438, %v1590
      %v1683 = vadd.f32 %v1439, %v1592
      %v1684 = vadd.f32 %v1440, %v1595
      %v1685 = vadd.f32 %v1441, %v1597
      %v1686 = vadd.f32 %v1442, %v1600
      %v1687 = vadd.f32 %v1443, %v1602
      %v1688 = vadd.f32 %v1444, %v1605
      %v1689 = vadd.f32 %v1445, %v1607
      %v1690 = vadd.f32 %v1446, %v1610
      %v1691 = vadd.f32 %v1447, %v1612
      %v1692 = vadd.f32 %v1448, %v1615
      %v1693 = vadd.f32 %v1449, %v1617
      %v1694 = vadd.f32 %v1450, %v1620
      %v1695 = vadd.f32 %v1451, %v1622
      %v1696 = vadd.f32 %v1452, %v1625
      %v1697 = vadd.f32 %v1453, %v1627
      %v1698 = vadd.f32 %v1454, %v1630
      %v1699 = vadd.f32 %v1455, %v1632
      %v1700 = vadd.f32 %v1456, %v1635
      %v1701 = vadd.f32 %v1457, %v1637
      %v1702 = vlaneseq
      %v1703 = vshrl.u32 %v1702, 7
      %v1704 = vsub.s32 0, %v1703
      %v1705 = vrot.slane %v307, %v1704
      %v1706 = vmul.f32 %v258, %v1705
      %v1707 = vmul.f32 %v259, %v1705
      %v1708 = vmul.f32 %v260, %v1705
      %v1709 = vmul.f32 %v261, %v1705
      %v1710 = vmul.f32 %v262, %v1705
      %v1711 = vmul.f32 %v263, %v1705
      %v1712 = vmul.f32 %v264, %v1705
      %v1713 = vmul.f32 %v265, %v1705
      %v1714 = vmul.f32 %v266, %v1705
      %v1715 = vmul.f32 %v267, %v1705
      %v1716 = vmul.f32 %v268, %v1705
      %v1717 = vmul.f32 %v269, %v1705
      %v1718 = vmul.f32 %v270, %v1705
      %v1719 = vmul.f32 %v271, %v1705
      %v1720 = vmul.f32 %v272, %v1705
      %v1721 = vmul.f32 %v273, %v1705
      %v1722 = vmul.f32 %v274, %v1705
      %v1723 = vmul.f32 %v275, %v1705
      %v1724 = vmul.f32 %v276, %v1705
      %v1725 = vmul.f32 %v277, %v1705
      %v1726 = vmul.f32 %v278, %v1705
      %v1727 = vmul.f32 %v279, %v1705
      %v1728 = vmul.f32 %v280, %v1705
      %v1729 = vmul.f32 %v281, %v1705
      %v1730 = vmul.f32 %v282, %v1705
      %v1731 = vmul.f32 %v283, %v1705
      %v1732 = vmul.f32 %v284, %v1705
      %v1733 = vmul.f32 %v285, %v1705
      %v1734 = vmul.f32 %v286, %v1705
      %v1735 = vmul.f32 %v287, %v1705
      %v1736 = vmul.f32 %v288, %v1705
      %v1737 = vmul.f32 %v289, %v1705
      %v1738 = vmul.f32 %v290, %v1705
      %v1739 = vmul.f32 %v291, %v1705
      %v1740 = vmul.f32 %v292, %v1705
      %v1741 = vmul.f32 %v293, %v1705
      %v1742 = vmul.f32 %v294, %v1705
      %v1743 = vmul.f32 %v295, %v1705
      %v1744 = vmul.f32 %v296, %v1705
      %v1745 = vmul.f32 %v297, %v1705
      %v1746 = vmul.f32 %v298, %v1705
      %v1747 = vmul.f32 %v299, %v1705
      %v1748 = vmul.f32 %v300, %v1705
      %v1749 = vmul.f32 %v301, %v1705
      %v1750 = vmul.f32 %v302, %v1705
      %v1751 = vmul.f32 %v303, %v1705
      %v1752 = vmul.f32 %v304, %v1705
      %v1753 = vmul.f32 %v305, %v1705
      %v1802 = vrot.slane %v1706, 2
      %v1803 = vrot.slane %v1707, 2
      %v1804 = vsel %vm689, %v1802, %v1803
      %v1805 = vrot.slane %v1708, 2
      %v1806 = vsel %vm689, %v1803, %v1805
      %v1807 = vrot.slane %v1709, 2
      %v1808 = vrot.slane %v1710, 2
      %v1809 = vsel %vm689, %v1807, %v1808
      %v1810 = vrot.slane %v1711, 2
      %v1811 = vsel %vm689, %v1808, %v1810
      %v1812 = vrot.slane %v1712, 2
      %v1813 = vrot.slane %v1713, 2
      %v1814 = vsel %vm689, %v1812, %v1813
      %v1815 = vrot.slane %v1714, 2
      %v1816 = vsel %vm689, %v1813, %v1815
      %v1817 = vrot.slane %v1715, 2
      %v1818 = vrot.slane %v1716, 2
      %v1819 = vsel %vm689, %v1817, %v1818
      %v1820 = vrot.slane %v1717, 2
      %v1821 = vsel %vm689, %v1818, %v1820
      %v1822 = vrot.slane %v1718, 2
      %v1823 = vrot.slane %v1719, 2
      %v1824 = vsel %vm689, %v1822, %v1823
      %v1825 = vrot.slane %v1720, 2
      %v1826 = vsel %vm689, %v1823, %v1825
      %v1827 = vrot.slane %v1721, 2
      %v1828 = vrot.slane %v1722, 2
      %v1829 = vsel %vm689, %v1827, %v1828
      %v1830 = vrot.slane %v1723, 2
      %v1831 = vsel %vm689, %v1828, %v1830
      %v1832 = vrot.slane %v1724, 2
      %v1833 = vrot.slane %v1725, 2
      %v1834 = vsel %vm689, %v1832, %v1833
      %v1835 = vrot.slane %v1726, 2
      %v1836 = vsel %vm689, %v1833, %v1835
      %v1837 = vrot.slane %v1727, 2
      %v1838 = vrot.slane %v1728, 2
      %v1839 = vsel %vm689, %v1837, %v1838
      %v1840 = vrot.slane %v1729, 2
      %v1841 = vsel %vm689, %v1838, %v1840
      %v1842 = vrot.slane %v1730, 2
      %v1843 = vrot.slane %v1731, 2
      %v1844 = vsel %vm689, %v1842, %v1843
      %v1845 = vrot.slane %v1732, 2
      %v1846 = vsel %vm689, %v1843, %v1845
      %v1847 = vrot.slane %v1733, 2
      %v1848 = vrot.slane %v1734, 2
      %v1849 = vsel %vm689, %v1847, %v1848
      %v1850 = vrot.slane %v1735, 2
      %v1851 = vsel %vm689, %v1848, %v1850
      %v1852 = vrot.slane %v1736, 2
      %v1853 = vrot.slane %v1737, 2
      %v1854 = vsel %vm689, %v1852, %v1853
      %v1855 = vrot.slane %v1738, 2
      %v1856 = vsel %vm689, %v1853, %v1855
      %v1857 = vrot.slane %v1739, 2
      %v1858 = vrot.slane %v1740, 2
      %v1859 = vsel %vm689, %v1857, %v1858
      %v1860 = vrot.slane %v1741, 2
      %v1861 = vsel %vm689, %v1858, %v1860
      %v1862 = vrot.slane %v1742, 2
      %v1863 = vrot.slane %v1743, 2
      %v1864 = vsel %vm689, %v1862, %v1863
      %v1865 = vrot.slane %v1744, 2
      %v1866 = vsel %vm689, %v1863, %v1865
      %v1867 = vrot.slane %v1745, 2
      %v1868 = vrot.slane %v1746, 2
      %v1869 = vsel %vm689, %v1867, %v1868
      %v1870 = vrot.slane %v1747, 2
      %v1871 = vsel %vm689, %v1868, %v1870
      %v1872 = vrot.slane %v1748, 2
      %v1873 = vrot.slane %v1749, 2
      %v1874 = vsel %vm689, %v1872, %v1873
      %v1875 = vrot.slane %v1750, 2
      %v1876 = vsel %vm689, %v1873, %v1875
      %v1877 = vrot.slane %v1751, 2
      %v1878 = vrot.slane %v1752, 2
      %v1879 = vsel %vm689, %v1877, %v1878
      %v1880 = vrot.slane %v1753, 2
      %v1881 = vsel %vm689, %v1878, %v1880
      %v1914 = vadd.f32 %v1670, %v1804
      %v1915 = vadd.f32 %v1671, %v1806
      %v1916 = vadd.f32 %v1672, %v1809
      %v1917 = vadd.f32 %v1673, %v1811
      %v1918 = vadd.f32 %v1674, %v1814
      %v1919 = vadd.f32 %v1675, %v1816
      %v1920 = vadd.f32 %v1676, %v1819
      %v1921 = vadd.f32 %v1677, %v1821
      %v1922 = vadd.f32 %v1678, %v1824
      %v1923 = vadd.f32 %v1679, %v1826
      %v1924 = vadd.f32 %v1680, %v1829
      %v1925 = vadd.f32 %v1681, %v1831
      %v1926 = vadd.f32 %v1682, %v1834
      %v1927 = vadd.f32 %v1683, %v1836
      %v1928 = vadd.f32 %v1684, %v1839
      %v1929 = vadd.f32 %v1685, %v1841
      %v1930 = vadd.f32 %v1686, %v1844
      %v1931 = vadd.f32 %v1687, %v1846
      %v1932 = vadd.f32 %v1688, %v1849
      %v1933 = vadd.f32 %v1689, %v1851
      %v1934 = vadd.f32 %v1690, %v1854
      %v1935 = vadd.f32 %v1691, %v1856
      %v1936 = vadd.f32 %v1692, %v1859
      %v1937 = vadd.f32 %v1693, %v1861
      %v1938 = vadd.f32 %v1694, %v1864
      %v1939 = vadd.f32 %v1695, %v1866
      %v1940 = vadd.f32 %v1696, %v1869
      %v1941 = vadd.f32 %v1697, %v1871
      %v1942 = vadd.f32 %v1698, %v1874
      %v1943 = vadd.f32 %v1699, %v1876
      %v1944 = vadd.f32 %v1700, %v1879
      %v1945 = vadd.f32 %v1701, %v1881
      %v1946 = vld [vmem:[%s2] sm:$0x1]
      %v1948 = vlaneseq
      %v1949 = vshrl.u32 %v1948, 7
      %v1950 = vsub.s32 0, %v1949
      %v1951 = vrot.slane %v1946, %v1950
      %v1953 = vmul.f32 %v1914, %v1951
      %v1954 = vmul.f32 %v1915, %v1951
      %v1955 = vmul.f32 %v1916, %v1951
      %v1956 = vmul.f32 %v1917, %v1951
      %v1957 = vmul.f32 %v1918, %v1951
      %v1958 = vmul.f32 %v1919, %v1951
      %v1959 = vmul.f32 %v1920, %v1951
      %v1960 = vmul.f32 %v1921, %v1951
      %v1961 = vmul.f32 %v1922, %v1951
      %v1962 = vmul.f32 %v1923, %v1951
      %v1963 = vmul.f32 %v1924, %v1951
      %v1964 = vmul.f32 %v1925, %v1951
      %v1965 = vmul.f32 %v1926, %v1951
      %v1966 = vmul.f32 %v1927, %v1951
      %v1967 = vmul.f32 %v1928, %v1951
      %v1968 = vmul.f32 %v1929, %v1951
      %v1969 = vmul.f32 %v1930, %v1951
      %v1970 = vmul.f32 %v1931, %v1951
      %v1971 = vmul.f32 %v1932, %v1951
      %v1972 = vmul.f32 %v1933, %v1951
      %v1973 = vmul.f32 %v1934, %v1951
      %v1974 = vmul.f32 %v1935, %v1951
      %v1975 = vmul.f32 %v1936, %v1951
      %v1976 = vmul.f32 %v1937, %v1951
      %v1977 = vmul.f32 %v1938, %v1951
      %v1978 = vmul.f32 %v1939, %v1951
      %v1979 = vmul.f32 %v1940, %v1951
      %v1980 = vmul.f32 %v1941, %v1951
      %v1981 = vmul.f32 %v1942, %v1951
      %v1982 = vmul.f32 %v1943, %v1951
      %v1983 = vmul.f32 %v1944, %v1951
      %v1984 = vmul.f32 %v1945, %v1951
      %v1985 = vld [vmem:[%s3] sm:$0x1]
      %v1987 = vlaneseq
      %v1988 = vshrl.u32 %v1987, 7
      %v1989 = vsub.s32 0, %v1988
      %v1990 = vrot.slane %v1985, %v1989
      %v1992 = vadd.f32 %v1953, %v1990
      %v1993 = vadd.f32 %v1954, %v1990
      %v1994 = vadd.f32 %v1955, %v1990
      %v1995 = vadd.f32 %v1956, %v1990
      %v1996 = vadd.f32 %v1957, %v1990
      %v1997 = vadd.f32 %v1958, %v1990
      %v1998 = vadd.f32 %v1959, %v1990
      %v1999 = vadd.f32 %v1960, %v1990
      %v2000 = vadd.f32 %v1961, %v1990
      %v2001 = vadd.f32 %v1962, %v1990
      %v2002 = vadd.f32 %v1963, %v1990
      %v2003 = vadd.f32 %v1964, %v1990
      %v2004 = vadd.f32 %v1965, %v1990
      %v2005 = vadd.f32 %v1966, %v1990
      %v2006 = vadd.f32 %v1967, %v1990
      %v2007 = vadd.f32 %v1968, %v1990
      %v2008 = vadd.f32 %v1969, %v1990
      %v2009 = vadd.f32 %v1970, %v1990
      %v2010 = vadd.f32 %v1971, %v1990
      %v2011 = vadd.f32 %v1972, %v1990
      %v2012 = vadd.f32 %v1973, %v1990
      %v2013 = vadd.f32 %v1974, %v1990
      %v2014 = vadd.f32 %v1975, %v1990
      %v2015 = vadd.f32 %v1976, %v1990
      %v2016 = vadd.f32 %v1977, %v1990
      %v2017 = vadd.f32 %v1978, %v1990
      %v2018 = vadd.f32 %v1979, %v1990
      %v2019 = vadd.f32 %v1980, %v1990
      %v2020 = vadd.f32 %v1981, %v1990
      %v2021 = vadd.f32 %v1982, %v1990
      %v2022 = vadd.f32 %v1983, %v1990
      %v2023 = vadd.f32 %v1984, %v1990
      %v2024 = vmax.f32 %v1992, 0.0
      %v2025 = vmax.f32 %v1993, 0.0
      %v2026 = vmax.f32 %v1994, 0.0
      %v2027 = vmax.f32 %v1995, 0.0
      %v2028 = vmax.f32 %v1996, 0.0
      %v2029 = vmax.f32 %v1997, 0.0
      %v2030 = vmax.f32 %v1998, 0.0
      %v2031 = vmax.f32 %v1999, 0.0
      %v2032 = vmax.f32 %v2000, 0.0
      %v2033 = vmax.f32 %v2001, 0.0
      %v2034 = vmax.f32 %v2002, 0.0
      %v2035 = vmax.f32 %v2003, 0.0
      %v2036 = vmax.f32 %v2004, 0.0
      %v2037 = vmax.f32 %v2005, 0.0
      %v2038 = vmax.f32 %v2006, 0.0
      %v2039 = vmax.f32 %v2007, 0.0
      %v2040 = vmax.f32 %v2008, 0.0
      %v2041 = vmax.f32 %v2009, 0.0
      %v2042 = vmax.f32 %v2010, 0.0
      %v2043 = vmax.f32 %v2011, 0.0
      %v2044 = vmax.f32 %v2012, 0.0
      %v2045 = vmax.f32 %v2013, 0.0
      %v2046 = vmax.f32 %v2014, 0.0
      %v2047 = vmax.f32 %v2015, 0.0
      %v2048 = vmax.f32 %v2016, 0.0
      %v2049 = vmax.f32 %v2017, 0.0
      %v2050 = vmax.f32 %v2018, 0.0
      %v2051 = vmax.f32 %v2019, 0.0
      %v2052 = vmax.f32 %v2020, 0.0
      %v2053 = vmax.f32 %v2021, 0.0
      %v2054 = vmax.f32 %v2022, 0.0
      %v2055 = vmax.f32 %v2023, 0.0
      %v2056 = vmin.f32 %v2024, 6.0
      %v2057 = vmin.f32 %v2025, 6.0
      %v2058 = vmin.f32 %v2026, 6.0
      %v2059 = vmin.f32 %v2027, 6.0
      %v2060 = vmin.f32 %v2028, 6.0
      %v2061 = vmin.f32 %v2029, 6.0
      %v2062 = vmin.f32 %v2030, 6.0
      %v2063 = vmin.f32 %v2031, 6.0
      %v2064 = vmin.f32 %v2032, 6.0
      %v2065 = vmin.f32 %v2033, 6.0
      %v2066 = vmin.f32 %v2034, 6.0
      %v2067 = vmin.f32 %v2035, 6.0
      %v2068 = vmin.f32 %v2036, 6.0
      %v2069 = vmin.f32 %v2037, 6.0
      %v2070 = vmin.f32 %v2038, 6.0
      %v2071 = vmin.f32 %v2039, 6.0
      %v2072 = vmin.f32 %v2040, 6.0
      %v2073 = vmin.f32 %v2041, 6.0
      %v2074 = vmin.f32 %v2042, 6.0
      %v2075 = vmin.f32 %v2043, 6.0
      %v2076 = vmin.f32 %v2044, 6.0
      %v2077 = vmin.f32 %v2045, 6.0
      %v2078 = vmin.f32 %v2046, 6.0
      %v2079 = vmin.f32 %v2047, 6.0
      %v2080 = vmin.f32 %v2048, 6.0
      %v2081 = vmin.f32 %v2049, 6.0
      %v2082 = vmin.f32 %v2050, 6.0
      %v2083 = vmin.f32 %v2051, 6.0
      %v2084 = vmin.f32 %v2052, 6.0
      %v2085 = vmin.f32 %v2053, 6.0
      %v2086 = vmin.f32 %v2054, 6.0
      %v2087 = vmin.f32 %v2055, 6.0
      %v2088 = vpack.c.bf16 %v2057, %v2056
      %v2089 = vpack.c.bf16 %v2059, %v2058
      %v2090 = vpack.c.bf16 %v2061, %v2060
      %v2091 = vpack.c.bf16 %v2063, %v2062
      %v2092 = vpack.c.bf16 %v2065, %v2064
      %v2093 = vpack.c.bf16 %v2067, %v2066
      %v2094 = vpack.c.bf16 %v2069, %v2068
      %v2095 = vpack.c.bf16 %v2071, %v2070
      %v2096 = vpack.c.bf16 %v2073, %v2072
      %v2097 = vpack.c.bf16 %v2075, %v2074
      %v2098 = vpack.c.bf16 %v2077, %v2076
      %v2099 = vpack.c.bf16 %v2079, %v2078
      %v2100 = vpack.c.bf16 %v2081, %v2080
      %v2101 = vpack.c.bf16 %v2083, %v2082
      %v2102 = vpack.c.bf16 %v2085, %v2084
      %v2103 = vpack.c.bf16 %v2087, %v2086
      %v2120 = vunpack.c.l.b16 %v2088
      %v2121 = vunpack.c.h.b16 %v2088
      %v2122 = vunpack.c.l.b16 %v2089
      %v2123 = vunpack.c.h.b16 %v2089
      %v2124 = vunpack.c.l.b16 %v2090
      %v2125 = vunpack.c.h.b16 %v2090
      %v2126 = vunpack.c.l.b16 %v2091
      %v2127 = vunpack.c.h.b16 %v2091
      %v2128 = vunpack.c.l.b16 %v2092
      %v2129 = vunpack.c.h.b16 %v2092
      %v2130 = vunpack.c.l.b16 %v2093
      %v2131 = vunpack.c.h.b16 %v2093
      %v2132 = vunpack.c.l.b16 %v2094
      %v2133 = vunpack.c.h.b16 %v2094
      %v2134 = vunpack.c.l.b16 %v2095
      %v2135 = vunpack.c.h.b16 %v2095
      %v2136 = vunpack.c.l.b16 %v2096
      %v2137 = vunpack.c.h.b16 %v2096
      %v2138 = vunpack.c.l.b16 %v2097
      %v2139 = vunpack.c.h.b16 %v2097
      %v2140 = vunpack.c.l.b16 %v2098
      %v2141 = vunpack.c.h.b16 %v2098
      %v2142 = vunpack.c.l.b16 %v2099
      %v2143 = vunpack.c.h.b16 %v2099
      %v2144 = vunpack.c.l.b16 %v2100
      %v2145 = vunpack.c.h.b16 %v2100
      %v2146 = vunpack.c.l.b16 %v2101
      %v2147 = vunpack.c.h.b16 %v2101
      %v2148 = vunpack.c.l.b16 %v2102
      %v2149 = vunpack.c.h.b16 %v2102
      %v2150 = vunpack.c.l.b16 %v2103
      %v2151 = vunpack.c.h.b16 %v2103
      %v2152 = vpack.c.b16 %v2120, %v2120
      %v2153 = vpack.c.b16 %v2121, %v2121
      %v2154 = vpack.c.b16 %v2122, %v2122
      %v2155 = vpack.c.b16 %v2123, %v2123
      %v2156 = vpack.c.b16 %v2124, %v2124
      %v2157 = vpack.c.b16 %v2125, %v2125
      %v2158 = vpack.c.b16 %v2126, %v2126
      %v2159 = vpack.c.b16 %v2127, %v2127
      %v2160 = vpack.c.b16 %v2128, %v2128
      %v2161 = vpack.c.b16 %v2129, %v2129
      %v2162 = vpack.c.b16 %v2130, %v2130
      %v2163 = vpack.c.b16 %v2131, %v2131
      %v2164 = vpack.c.b16 %v2132, %v2132
      %v2165 = vpack.c.b16 %v2133, %v2133
      %v2166 = vpack.c.b16 %v2134, %v2134
      %v2167 = vpack.c.b16 %v2135, %v2135
      %v2168 = vpack.c.b16 %v2136, %v2136
      %v2169 = vpack.c.b16 %v2137, %v2137
      %v2170 = vpack.c.b16 %v2138, %v2138
      %v2171 = vpack.c.b16 %v2139, %v2139
      %v2172 = vpack.c.b16 %v2140, %v2140
      %v2173 = vpack.c.b16 %v2141, %v2141
      %v2174 = vpack.c.b16 %v2142, %v2142
      %v2175 = vpack.c.b16 %v2143, %v2143
      %v2176 = vpack.c.b16 %v2144, %v2144
      %v2177 = vpack.c.b16 %v2145, %v2145
      %v2178 = vpack.c.b16 %v2146, %v2146
      %v2179 = vpack.c.b16 %v2147, %v2147
      %v2180 = vpack.c.b16 %v2148, %v2148
      %v2181 = vpack.c.b16 %v2149, %v2149
      %v2182 = vpack.c.b16 %v2150, %v2150
      %v2183 = vpack.c.b16 %v2151, %v2151
      %vm2216 = vcmask 27648
      %2217 = vst.msk [vmem:[%s197] sm:$0xf] %vm2216, %v2152
      %2218 = vst.msk [vmem:[%s197 + $0x4] sm:$0xf] %vm2216, %v2153
      %2219 = vst.msk [vmem:[%s197 + $0x8] sm:$0xf] %vm2216, %v2154
      %2220 = vst.msk [vmem:[%s197 + $0xc] sm:$0xf] %vm2216, %v2155
      %2221 = vst.msk [vmem:[%s197 + $0x10] sm:$0xf] %vm2216, %v2156
      %2222 = vst.msk [vmem:[%s197 + $0x14] sm:$0xf] %vm2216, %v2157
      %2223 = vst.msk [vmem:[%s197 + $0x18] sm:$0xf] %vm2216, %v2158
      %2224 = vst.msk [vmem:[%s197 + $0x1c] sm:$0xf] %vm2216, %v2159
      %2225 = vst.msk [vmem:[%s197 + $0x20] sm:$0xf] %vm2216, %v2160
      %2226 = vst.msk [vmem:[%s197 + $0x24] sm:$0xf] %vm2216, %v2161
      %2227 = vst.msk [vmem:[%s197 + $0x28] sm:$0xf] %vm2216, %v2162
      %2228 = vst.msk [vmem:[%s197 + $0x2c] sm:$0xf] %vm2216, %v2163
      %2229 = vst.msk [vmem:[%s197 + $0x30] sm:$0xf] %vm2216, %v2164
      %2230 = vst.msk [vmem:[%s197 + $0x34] sm:$0xf] %vm2216, %v2165
      %2231 = vst.msk [vmem:[%s197 + $0x38] sm:$0xf] %vm2216, %v2166
      %2232 = vst.msk [vmem:[%s197 + $0x3c] sm:$0xf] %vm2216, %v2167
      %2233 = vst.msk [vmem:[%s197 + $0x40] sm:$0xf] %vm2216, %v2168
      %2234 = vst.msk [vmem:[%s197 + $0x44] sm:$0xf] %vm2216, %v2169
      %2235 = vst.msk [vmem:[%s197 + $0x48] sm:$0xf] %vm2216, %v2170
      %2236 = vst.msk [vmem:[%s197 + $0x4c] sm:$0xf] %vm2216, %v2171
      %2237 = vst.msk [vmem:[%s197 + $0x50] sm:$0xf] %vm2216, %v2172
      %2238 = vst.msk [vmem:[%s197 + $0x54] sm:$0xf] %vm2216, %v2173
      %2239 = vst.msk [vmem:[%s197 + $0x58] sm:$0xf] %vm2216, %v2174
      %2240 = vst.msk [vmem:[%s197 + $0x5c] sm:$0xf] %vm2216, %v2175
      %2241 = vst.msk [vmem:[%s197 + $0x60] sm:$0xf] %vm2216, %v2176
      %2242 = vst.msk [vmem:[%s197 + $0x64] sm:$0xf] %vm2216, %v2177
      %2243 = vst.msk [vmem:[%s197 + $0x68] sm:$0xf] %vm2216, %v2178
      %2244 = vst.msk [vmem:[%s197 + $0x6c] sm:$0xf] %vm2216, %v2179
      %2245 = vst.msk [vmem:[%s197 + $0x70] sm:$0xf] %vm2216, %v2180
      %2246 = vst.msk [vmem:[%s197 + $0x74] sm:$0xf] %vm2216, %v2181
      %2247 = vst.msk [vmem:[%s197 + $0x78] sm:$0xf] %vm2216, %v2182
      %2248 = vst.msk [vmem:[%s197 + $0x7c] sm:$0xf] %vm2216, %v2183
      %p2249 = scmp.lt.s32.totalorder %s15, 1
      %s2250 = scalar_select %p2249, %s15, 1
      %s2251 = smul.addr %s2250, 32
      %s2252 = smul.addr %s2251, 4
      %s2253 = scalar_lea.vmem %s4, %s2252
      // Predicated region
      $region37: #{tpu_custom_call.1} parent=35 // pred_check
        %p2254 = pneg %p122
      $region38: #{tpu_custom_call.1} parent=35 // pred_check_branch
        %2256 = sbr.rel (%p2254) target = $region40
      $region39: #{tpu_custom_call.1} parent=35 // pred_region
        _
      $region40: #{tpu_custom_call.1} parent=35 // pred_fallthru
        _
    $region36: #{tpu_custom_call.1} parent=5 // pred_fallthru
      _
    %p2257 = scmp.le.s32.totalorder 2, %s10
    // Predicated region
    $region41: #{tpu_custom_call.1} parent=5 // pred_check
      %p2258 = pneg %p2257
    $region42: #{tpu_custom_call.1} parent=5 // pred_check_branch
      %2260 = sbr.rel (%p2258) target = $region44
    $region43: #{tpu_custom_call.1} parent=5 // pred_region
      %s2261 = ssub.s32 %s10, 2
      // Predicated region
      $region45: #{tpu_custom_call.1} parent=43 // pred_check
        %p2262 = pneg %p128
      $region46: #{tpu_custom_call.1} parent=43 // pred_check_branch
        %2264 = sbr.rel (%p2262) target = $region48
      $region47: #{tpu_custom_call.1} parent=43 // pred_region
        %p2265 = scmp.lt.s32.totalorder %s16, 1
        %s2266 = scalar_select %p2265, %s16, 1
        %s2267 = smul.addr %s2266, 32
        %s2268 = smul.addr %s2267, 4
        %s2269 = scalar_lea.vmem %s4, %s2268
      $region48: #{tpu_custom_call.1} parent=43 // pred_fallthru
        _
    $region44: #{tpu_custom_call.1} parent=5 // pred_fallthru
      _
  $region6: #{tpu_custom_call.1} parent=0 // loop_footer
    %s14 = sadd.s32 1, %s10
  $region7: #{tpu_custom_call.1} parent=0 // loop_footer_branch
    %9 = sbr.rel target = $region3
  $region8: #{tpu_custom_call.1} parent=0 // loop_exit
    _

</llo_original>
